<compile_context>
chip_gen: v6e
topology: v6e:2x2x1
jax: 0.10.0
libtpu: 0.0.40
codegen_flags: <defaults>
</compile_context>

<pallas_src>
import jax
import jax.numpy as jnp
import numpy as np
from jax import lax
from jax.experimental import pallas as pl
from jax.experimental.pallas import tpu as pltpu


# ---------------------------------------------------------------------------
# Fused kernel: MaxPool2d(2) -> [Conv3x3(pad=1) + folded-BN + ReLU] x 2
# ---------------------------------------------------------------------------
def down1_fused_kernel(x_ref, w1_ref, sb1_ref, w2_ref, sb2_ref, o_ref,
                       p1_ref, p2_ref):
    # x_ref  : (1, Ho, 2, Wo, 2, Cin)  pool-factored view of one input image
    # w1_ref : (9*Cin, Cmid)           im2col weights, tap k = 3*dy + dx, cin fastest
    # sb1_ref: (2, Cmid)               row 0 = folded BN scale, row 1 = folded bias
    # w2_ref : (9*Cmid, Cout)
    # sb2_ref: (2, Cout)
    # o_ref  : (1, Ho*Wo, Cout)
    # p1_ref : VMEM scratch (Ho+2, Wo+2, Cin)   zero-padded pooled tile
    # p2_ref : VMEM scratch (Ho+2, Wo+2, Cmid)  zero-padded conv1 output
    Ho, Wo, Cin = p1_ref.shape[0] - 2, p1_ref.shape[1] - 2, p1_ref.shape[2]
    Cmid = p2_ref.shape[2]
    Cout = o_ref.shape[2]

    # ---- MaxPool2d(2), entirely in VMEM/registers ----
    x = x_ref[...]                                   # (1, Ho, 2, Wo, 2, Cin)
    a = jnp.maximum(x[:, :, 0], x[:, :, 1])          # reduce H-pair -> (1, Ho, Wo, 2, Cin)
    pooled = jnp.max(a, axis=3)[0]                   # reduce W-pair -> (Ho, Wo, Cin)

    def conv3x3_bn_relu(p_ref, w_ref, sb_ref, cin):
        # One im2col matmul per conv: (Ho*Wo, 9*cin) x (9*cin, cout) on the MXU.
        xp = p_ref[...]                              # (Ho+2, Wo+2, cin)
        cols = [xp[dy:dy + Ho, dx:dx + Wo, :]
                for dy in range(3) for dx in range(3)]
        patches = jnp.concatenate(cols, axis=-1).reshape(Ho * Wo, 9 * cin)
        acc = jnp.dot(patches, w_ref[...], preferred_element_type=jnp.float32)
        return jnp.maximum(acc * sb_ref[0:1, :] + sb_ref[1:2, :], 0.0)

    # ---- conv1: halo built in VMEM scratch (no HBM pad, no HBM intermediate) ----
    p1_ref[...] = jnp.zeros_like(p1_ref)
    p1_ref[1:Ho + 1, 1:Wo + 1, :] = pooled
    y1 = conv3x3_bn_relu(p1_ref, w1_ref, sb1_ref, Cin)        # (Ho*Wo, Cmid)

    # ---- conv2 ----
    p2_ref[...] = jnp.zeros_like(p2_ref)
    p2_ref[1:Ho + 1, 1:Wo + 1, :] = y1.reshape(Ho, Wo, Cmid)
    y2 = conv3x3_bn_relu(p2_ref, w2_ref, sb2_ref, Cmid)       # (Ho*Wo, Cout)

    o_ref[...] = y2.reshape(1, Ho * Wo, Cout).astype(o_ref.dtype)


def down1_pallas(x_nhwc, w1, sb1, w2, sb2):
    # x_nhwc: (N, H, W, Cin) with H, W even; returns (N, Ho, Wo, Cout).
    N, H, W, Cin = x_nhwc.shape
    Ho, Wo = H // 2, W // 2
    Cmid, Cout = sb1.shape[1], sb2.shape[1]
    # Contiguous (free) host reshape exposing the 2x2 pool windows to the kernel.
    x6 = x_nhwc.reshape(N, Ho, 2, Wo, 2, Cin)
    # TODO(synk): at production sizes, tile H into row strips (second parallel grid
    # axis for the two v7x TensorCores) and set vmem_limit_bytes for 64 MiB VMEM.
    out = pl.pallas_call(
        down1_fused_kernel,
        out_shape=jax.ShapeDtypeStruct((N, Ho * Wo, Cout), x_nhwc.dtype),
        grid=(N,),
        in_specs=[
            pl.BlockSpec((1, Ho, 2, Wo, 2, Cin), lambda n: (n, 0, 0, 0, 0, 0)),
            pl.BlockSpec((9 * Cin, Cmid), lambda n: (0, 0)),
            pl.BlockSpec((2, Cmid), lambda n: (0, 0)),
            pl.BlockSpec((9 * Cmid, Cout), lambda n: (0, 0)),
            pl.BlockSpec((2, Cout), lambda n: (0, 0)),
        ],
        out_specs=pl.BlockSpec((1, Ho * Wo, Cout), lambda n: (n, 0, 0)),
        scratch_shapes=[
            pltpu.VMEM((Ho + 2, Wo + 2, Cin), jnp.float32),
            pltpu.VMEM((Ho + 2, Wo + 2, Cmid), jnp.float32),
        ],
        compiler_params=pltpu.CompilerParams(dimension_semantics=("parallel",)),
    )(x6, w1, sb1, w2, sb2)
    return out.reshape(N, Ho, Wo, Cout)


# ---------------------------------------------------------------------------
# Parameter setup (deterministic, synthetic) and Down1 forward.
# ---------------------------------------------------------------------------
def make_params(key, cin, cout):
    def conv_bn(k, ci, co):
        kw, kb, kg, kbe, km, kv = jax.random.split(k, 6)
        return dict(
            w=jax.random.normal(kw, (3, 3, ci, co), jnp.float32) / np.sqrt(9.0 * ci),
            b=0.1 * jax.random.normal(kb, (co,), jnp.float32),
            gamma=1.0 + 0.1 * jax.random.normal(kg, (co,), jnp.float32),
            beta=0.1 * jax.random.normal(kbe, (co,), jnp.float32),
            mean=0.1 * jax.random.normal(km, (co,), jnp.float32),
            var=jnp.abs(jax.random.normal(kv, (co,), jnp.float32)) + 0.5,
        )
    k1, k2 = jax.random.split(key)
    return dict(c1=conv_bn(k1, cin, cout), c2=conv_bn(k2, cout, cout))


def fold_bn(p, eps=1e-5):
    # Fold eval-mode BN + conv bias into per-channel scale & bias; reshape the
    # HWIO conv weights into im2col layout (9*Cin, Cout), tap-major / cin fastest.
    s = p["gamma"] / jnp.sqrt(p["var"] + eps)
    bias = p["beta"] + s * (p["b"] - p["mean"])
    ci, co = p["w"].shape[2], p["w"].shape[3]
    w_im2col = p["w"].reshape(9 * ci, co)
    sb = jnp.stack([s, bias], axis=0)                # (2, Cout)
    return w_im2col, sb


def down1_forward(x_nchw, params):
    # Dropout2d(p=0.2): identity in eval mode.
    x = jnp.transpose(x_nchw, (0, 2, 3, 1))          # NCHW -> NHWC
    w1, sb1 = fold_bn(params["c1"])
    w2, sb2 = fold_bn(params["c2"])
    y = down1_pallas(x, w1, sb1, w2, sb2)
    return jnp.transpose(y, (0, 3, 1, 2))            # NHWC -> NCHW


# Pure-JAX reference (same eval-mode semantics), used only for verification.
def down1_reference(x_nchw, params, eps=1e-5):
    x = jnp.transpose(x_nchw, (0, 2, 3, 1))
    x = lax.reduce_window(x, -jnp.inf, lax.max, (1, 2, 2, 1), (1, 2, 2, 1), "VALID")
    for p in (params["c1"], params["c2"]):
        z = lax.conv_general_dilated(
            x, p["w"], (1, 1), "SAME",
            dimension_numbers=("NHWC", "HWIO", "NHWC")) + p["b"]
        z = (z - p["mean"]) / jnp.sqrt(p["var"] + eps) * p["gamma"] + p["beta"]
        x = jnp.maximum(z, 0.0)
    return jnp.transpose(x, (0, 3, 1, 2))


if __name__ == "__main__":
    key = jax.random.PRNGKey(0)
    kx, kp = jax.random.split(key)

    N, Cin, H, W, Cout = 2, 4, 16, 16, 8
    x = jax.random.normal(kx, (N, Cin, H, W), jnp.float32)   # NCHW, like PyTorch
    params = make_params(kp, Cin, Cout)

    out = jax.block_until_ready(down1_forward(x, params))
    ref = jax.block_until_ready(down1_reference(x, params))

    assert out.shape == (N, Cout, H // 2, W // 2), out.shape
    np.testing.assert_allclose(np.asarray(out), np.asarray(ref), rtol=1e-4, atol=1e-4)
    print("KERNEL_OK")
</pallas_src>

<mosaic_0001>
module attributes {stable_mosaic.version = 11 : i64} {
  func.func @down1_fused_kernel(%arg0: i32, %arg1: memref<1x8x2x8x2x4xf32, #tpu.memory_space<vmem>>, %arg2: memref<36x8xf32, #tpu.memory_space<vmem>>, %arg3: memref<2x8xf32, #tpu.memory_space<vmem>>, %arg4: memref<72x8xf32, #tpu.memory_space<vmem>>, %arg5: memref<2x8xf32, #tpu.memory_space<vmem>>, %arg6: memref<1x64x8xf32, #tpu.memory_space<vmem>>, %arg7: memref<10x10x4xf32, #tpu.memory_space<vmem>>, %arg8: memref<10x10x8xf32, #tpu.memory_space<vmem>>) attributes {dimension_semantics = [#tpu.dimension_semantics<parallel>], iteration_bounds = array<i64: 2>, scalar_prefetch = 0 : i64, scratch_operands = 2 : i64, tpu.core_type = #tpu.core_type<tc>, window_params = [{transform_indices = @transform_0, window_bounds = array<i64: 1, 8, 2, 8, 2, 4>}, {pipeline_mode = #tpu.pipeline_mode<synchronous>, transform_indices = @transform_1, window_bounds = array<i64: 36, 8>}, {pipeline_mode = #tpu.pipeline_mode<synchronous>, transform_indices = @transform_2, window_bounds = array<i64: 2, 8>}, {pipeline_mode = #tpu.pipeline_mode<synchronous>, transform_indices = @transform_3, window_bounds = array<i64: 72, 8>}, {pipeline_mode = #tpu.pipeline_mode<synchronous>, transform_indices = @transform_4, window_bounds = array<i64: 2, 8>}, {transform_indices = @transform_5, window_bounds = array<i64: 1, 64, 8>}]} {
    %c0 = arith.constant 0 : index
    %c0_0 = arith.constant 0 : index
    %c0_1 = arith.constant 0 : index
    %c0_2 = arith.constant 0 : index
    %c0_3 = arith.constant 0 : index
    %c0_4 = arith.constant 0 : index
    %0 = vector.load %arg1[%c0, %c0_0, %c0_1, %c0_2, %c0_3, %c0_4] : memref<1x8x2x8x2x4xf32, #tpu.memory_space<vmem>>, vector<1x8x2x8x2x4xf32>
    %1 = vector.extract_strided_slice %0 {offsets = [0, 0, 0, 0, 0, 0], sizes = [1, 8, 1, 8, 2, 4], strides = [1, 1, 1, 1, 1, 1]} : vector<1x8x2x8x2x4xf32> to vector<1x8x1x8x2x4xf32>
    %2 = vector.shape_cast %1 : vector<1x8x1x8x2x4xf32> to vector<1x8x8x2x4xf32>
    %3 = vector.extract_strided_slice %0 {offsets = [0, 0, 1, 0, 0, 0], sizes = [1, 8, 1, 8, 2, 4], strides = [1, 1, 1, 1, 1, 1]} : vector<1x8x2x8x2x4xf32> to vector<1x8x1x8x2x4xf32>
    %4 = vector.shape_cast %3 : vector<1x8x1x8x2x4xf32> to vector<1x8x8x2x4xf32>
    %5 = arith.maximumf %2, %4 : vector<1x8x8x2x4xf32>
    %cst = arith.constant dense<0xFF800000> : vector<1x8x8x4xf32>
    %6 = vector.multi_reduction <maximumf>, %5, %cst [3] : vector<1x8x8x2x4xf32> to vector<1x8x8x4xf32>
    %7 = vector.shape_cast %6 : vector<1x8x8x4xf32> to vector<8x8x4xf32>
    %cst_5 = arith.constant 0.000000e+00 : f32
    %8 = vector.broadcast %cst_5 : f32 to vector<10x10x4xf32>
    %c0_6 = arith.constant 0 : index
    %c0_7 = arith.constant 0 : index
    %c0_8 = arith.constant 0 : index
    %9 = vector.load %arg7[%c0_6, %c0_7, %c0_8] : memref<10x10x4xf32, #tpu.memory_space<vmem>>, vector<10x10x4xf32>
    tpu.vector_store %arg7[%c0_6, %c0_7, %c0_8], %8 {strides = array<i32>} : memref<10x10x4xf32, #tpu.memory_space<vmem>>, vector<10x10x4xf32>,
    %c1 = arith.constant 1 : index
    %c1_9 = arith.constant 1 : index
    %c0_10 = arith.constant 0 : index
    %10 = vector.load %arg7[%c1, %c1_9, %c0_10] : memref<10x10x4xf32, #tpu.memory_space<vmem>>, vector<8x8x4xf32>
    tpu.vector_store %arg7[%c1, %c1_9, %c0_10], %7 {strides = array<i32>} : memref<10x10x4xf32, #tpu.memory_space<vmem>>, vector<8x8x4xf32>,
    %c0_11 = arith.constant 0 : index
    %c0_12 = arith.constant 0 : index
    %c0_13 = arith.constant 0 : index
    %11 = vector.load %arg7[%c0_11, %c0_12, %c0_13] : memref<10x10x4xf32, #tpu.memory_space<vmem>>, vector<10x10x4xf32>
    %12 = vector.extract_strided_slice %11 {offsets = [0, 0, 0], sizes = [8, 8, 4], strides = [1, 1, 1]} : vector<10x10x4xf32> to vector<8x8x4xf32>
    %13 = vector.extract_strided_slice %11 {offsets = [0, 1, 0], sizes = [8, 8, 4], strides = [1, 1, 1]} : vector<10x10x4xf32> to vector<8x8x4xf32>
    %14 = vector.extract_strided_slice %11 {offsets = [0, 2, 0], sizes = [8, 8, 4], strides = [1, 1, 1]} : vector<10x10x4xf32> to vector<8x8x4xf32>
    %15 = vector.extract_strided_slice %11 {offsets = [1, 0, 0], sizes = [8, 8, 4], strides = [1, 1, 1]} : vector<10x10x4xf32> to vector<8x8x4xf32>
    %16 = vector.extract_strided_slice %11 {offsets = [1, 1, 0], sizes = [8, 8, 4], strides = [1, 1, 1]} : vector<10x10x4xf32> to vector<8x8x4xf32>
    %17 = vector.extract_strided_slice %11 {offsets = [1, 2, 0], sizes = [8, 8, 4], strides = [1, 1, 1]} : vector<10x10x4xf32> to vector<8x8x4xf32>
    %18 = vector.extract_strided_slice %11 {offsets = [2, 0, 0], sizes = [8, 8, 4], strides = [1, 1, 1]} : vector<10x10x4xf32> to vector<8x8x4xf32>
    %19 = vector.extract_strided_slice %11 {offsets = [2, 1, 0], sizes = [8, 8, 4], strides = [1, 1, 1]} : vector<10x10x4xf32> to vector<8x8x4xf32>
    %20 = vector.extract_strided_slice %11 {offsets = [2, 2, 0], sizes = [8, 8, 4], strides = [1, 1, 1]} : vector<10x10x4xf32> to vector<8x8x4xf32>
    %21 = tpu.concatenate %12, %13, %14, %15, %16, %17, %18, %19, %20 in 2 : vector<8x8x4xf32>, vector<8x8x4xf32>, vector<8x8x4xf32>, vector<8x8x4xf32>, vector<8x8x4xf32>, vector<8x8x4xf32>, vector<8x8x4xf32>, vector<8x8x4xf32>, vector<8x8x4xf32> -> vector<8x8x36xf32>
    %22 = vector.shape_cast %21 : vector<8x8x36xf32> to vector<64x36xf32>
    %c0_14 = arith.constant 0 : index
    %c0_15 = arith.constant 0 : index
    %23 = vector.load %arg2[%c0_14, %c0_15] : memref<36x8xf32, #tpu.memory_space<vmem>>, vector<36x8xf32>
    %cst_16 = arith.constant dense<0.000000e+00> : vector<64x8xf32>
    %24 = tpu.matmul %22, %23, %cst_16 {dimension_numbers = #tpu.dot_dimension_numbers<[1], [0], [0], [1], [0, 0, 1, 1], [], []>} : vector<64x36xf32>, vector<36x8xf32>, vector<64x8xf32> -> vector<64x8xf32>
    %c0_17 = arith.constant 0 : index
    %c0_18 = arith.constant 0 : index
    %25 = vector.load %arg3[%c0_17, %c0_18] : memref<2x8xf32, #tpu.memory_space<vmem>>, vector<1x8xf32>
    %26 = vector.broadcast %25 : vector<1x8xf32> to vector<64x8xf32>
    %27 = arith.mulf %24, %26 : vector<64x8xf32>
    %c1_19 = arith.constant 1 : index
    %c0_20 = arith.constant 0 : index
    %28 = vector.load %arg3[%c1_19, %c0_20] : memref<2x8xf32, #tpu.memory_space<vmem>>, vector<1x8xf32>
    %29 = vector.broadcast %28 : vector<1x8xf32> to vector<64x8xf32>
    %30 = arith.addf %27, %29 : vector<64x8xf32>
    %cst_21 = arith.constant 0.000000e+00 : f32
    %31 = vector.broadcast %cst_21 : f32 to vector<64x8xf32>
    %32 = arith.maximumf %30, %31 : vector<64x8xf32>
    %cst_22 = arith.constant 0.000000e+00 : f32
    %33 = vector.broadcast %cst_22 : f32 to vector<10x10x8xf32>
    %c0_23 = arith.constant 0 : index
    %c0_24 = arith.constant 0 : index
    %c0_25 = arith.constant 0 : index
    %34 = vector.load %arg8[%c0_23, %c0_24, %c0_25] : memref<10x10x8xf32, #tpu.memory_space<vmem>>, vector<10x10x8xf32>
    tpu.vector_store %arg8[%c0_23, %c0_24, %c0_25], %33 {strides = array<i32>} : memref<10x10x8xf32, #tpu.memory_space<vmem>>, vector<10x10x8xf32>,
    %35 = vector.shape_cast %32 : vector<64x8xf32> to vector<8x8x8xf32>
    %c1_26 = arith.constant 1 : index
    %c1_27 = arith.constant 1 : index
    %c0_28 = arith.constant 0 : index
    %36 = vector.load %arg8[%c1_26, %c1_27, %c0_28] : memref<10x10x8xf32, #tpu.memory_space<vmem>>, vector<8x8x8xf32>
    tpu.vector_store %arg8[%c1_26, %c1_27, %c0_28], %35 {strides = array<i32>} : memref<10x10x8xf32, #tpu.memory_space<vmem>>, vector<8x8x8xf32>,
    %c0_29 = arith.constant 0 : index
    %c0_30 = arith.constant 0 : index
    %c0_31 = arith.constant 0 : index
    %37 = vector.load %arg8[%c0_29, %c0_30, %c0_31] : memref<10x10x8xf32, #tpu.memory_space<vmem>>, vector<10x10x8xf32>
    %38 = vector.extract_strided_slice %37 {offsets = [0, 0, 0], sizes = [8, 8, 8], strides = [1, 1, 1]} : vector<10x10x8xf32> to vector<8x8x8xf32>
    %39 = vector.extract_strided_slice %37 {offsets = [0, 1, 0], sizes = [8, 8, 8], strides = [1, 1, 1]} : vector<10x10x8xf32> to vector<8x8x8xf32>
    %40 = vector.extract_strided_slice %37 {offsets = [0, 2, 0], sizes = [8, 8, 8], strides = [1, 1, 1]} : vector<10x10x8xf32> to vector<8x8x8xf32>
    %41 = vector.extract_strided_slice %37 {offsets = [1, 0, 0], sizes = [8, 8, 8], strides = [1, 1, 1]} : vector<10x10x8xf32> to vector<8x8x8xf32>
    %42 = vector.extract_strided_slice %37 {offsets = [1, 1, 0], sizes = [8, 8, 8], strides = [1, 1, 1]} : vector<10x10x8xf32> to vector<8x8x8xf32>
    %43 = vector.extract_strided_slice %37 {offsets = [1, 2, 0], sizes = [8, 8, 8], strides = [1, 1, 1]} : vector<10x10x8xf32> to vector<8x8x8xf32>
    %44 = vector.extract_strided_slice %37 {offsets = [2, 0, 0], sizes = [8, 8, 8], strides = [1, 1, 1]} : vector<10x10x8xf32> to vector<8x8x8xf32>
    %45 = vector.extract_strided_slice %37 {offsets = [2, 1, 0], sizes = [8, 8, 8], strides = [1, 1, 1]} : vector<10x10x8xf32> to vector<8x8x8xf32>
    %46 = vector.extract_strided_slice %37 {offsets = [2, 2, 0], sizes = [8, 8, 8], strides = [1, 1, 1]} : vector<10x10x8xf32> to vector<8x8x8xf32>
    %47 = tpu.concatenate %38, %39, %40, %41, %42, %43, %44, %45, %46 in 2 : vector<8x8x8xf32>, vector<8x8x8xf32>, vector<8x8x8xf32>, vector<8x8x8xf32>, vector<8x8x8xf32>, vector<8x8x8xf32>, vector<8x8x8xf32>, vector<8x8x8xf32>, vector<8x8x8xf32> -> vector<8x8x72xf32>
    %48 = vector.shape_cast %47 : vector<8x8x72xf32> to vector<64x72xf32>
    %c0_32 = arith.constant 0 : index
    %c0_33 = arith.constant 0 : index
    %49 = vector.load %arg4[%c0_32, %c0_33] : memref<72x8xf32, #tpu.memory_space<vmem>>, vector<72x8xf32>
    %cst_34 = arith.constant dense<0.000000e+00> : vector<64x8xf32>
    %50 = tpu.matmul %48, %49, %cst_34 {dimension_numbers = #tpu.dot_dimension_numbers<[1], [0], [0], [1], [0, 0, 1, 1], [], []>} : vector<64x72xf32>, vector<72x8xf32>, vector<64x8xf32> -> vector<64x8xf32>
    %c0_35 = arith.constant 0 : index
    %c0_36 = arith.constant 0 : index
    %51 = vector.load %arg5[%c0_35, %c0_36] : memref<2x8xf32, #tpu.memory_space<vmem>>, vector<1x8xf32>
    %52 = vector.broadcast %51 : vector<1x8xf32> to vector<64x8xf32>
    %53 = arith.mulf %50, %52 : vector<64x8xf32>
    %c1_37 = arith.constant 1 : index
    %c0_38 = arith.constant 0 : index
    %54 = vector.load %arg5[%c1_37, %c0_38] : memref<2x8xf32, #tpu.memory_space<vmem>>, vector<1x8xf32>
    %55 = vector.broadcast %54 : vector<1x8xf32> to vector<64x8xf32>
    %56 = arith.addf %53, %55 : vector<64x8xf32>
    %cst_39 = arith.constant 0.000000e+00 : f32
    %57 = vector.broadcast %cst_39 : f32 to vector<64x8xf32>
    %58 = arith.maximumf %56, %57 : vector<64x8xf32>
    %59 = vector.shape_cast %58 : vector<64x8xf32> to vector<1x64x8xf32>
    %c0_40 = arith.constant 0 : index
    %c0_41 = arith.constant 0 : index
    %c0_42 = arith.constant 0 : index
    %60 = vector.load %arg6[%c0_40, %c0_41, %c0_42] : memref<1x64x8xf32, #tpu.memory_space<vmem>>, vector<1x64x8xf32>
    tpu.vector_store %arg6[%c0_40, %c0_41, %c0_42], %59 {strides = array<i32>} : memref<1x64x8xf32, #tpu.memory_space<vmem>>, vector<1x64x8xf32>,
    return
  }
  func.func @transform_0(%arg0: i32) -> (i32, i32, i32, i32, i32, i32) {
    %c0_i32 = arith.constant 0 : i32
    %c0_i32_0 = arith.constant 0 : i32
    %c0_i32_1 = arith.constant 0 : i32
    %c0_i32_2 = arith.constant 0 : i32
    %c0_i32_3 = arith.constant 0 : i32
    %c0_i32_4 = arith.constant 0 : i32
    return %arg0, %c0_i32, %c0_i32_0, %c0_i32_1, %c0_i32_2, %c0_i32_3 : i32, i32, i32, i32, i32, i32
  }
  func.func @transform_1(%arg0: i32) -> (i32, i32) {
    %c0_i32 = arith.constant 0 : i32
    %c0_i32_0 = arith.constant 0 : i32
    %c0_i32_1 = arith.constant 0 : i32
    return %c0_i32, %c0_i32_0 : i32, i32
  }
  func.func @transform_2(%arg0: i32) -> (i32, i32) {
    %c0_i32 = arith.constant 0 : i32
    %c0_i32_0 = arith.constant 0 : i32
    %c0_i32_1 = arith.constant 0 : i32
    return %c0_i32, %c0_i32_0 : i32, i32
  }
  func.func @transform_3(%arg0: i32) -> (i32, i32) {
    %c0_i32 = arith.constant 0 : i32
    %c0_i32_0 = arith.constant 0 : i32
    %c0_i32_1 = arith.constant 0 : i32
    return %c0_i32, %c0_i32_0 : i32, i32
  }
  func.func @transform_4(%arg0: i32) -> (i32, i32) {
    %c0_i32 = arith.constant 0 : i32
    %c0_i32_0 = arith.constant 0 : i32
    %c0_i32_1 = arith.constant 0 : i32
    return %c0_i32, %c0_i32_0 : i32, i32
  }
  func.func @transform_5(%arg0: i32) -> (i32, i32, i32) {
    %c0_i32 = arith.constant 0 : i32
    %c0_i32_0 = arith.constant 0 : i32
    %c0_i32_1 = arith.constant 0 : i32
    return %arg0, %c0_i32, %c0_i32_0 : i32, i32, i32
  }
}

</mosaic_0001>

<llo_original>
// kernel: tpu_custom_call.1
$region0: #{tpu_custom_call.1}
  #allocation0 [shape = 'u32[]', space=smem, size = 0x4, offset = 0x4, fixed_abs, tag = 'smem constant byte address 0x4 - core index']
  #allocation1 [shape = 'u32[144,128]{1,0:T(1,128)}', space=vmem, size = 0x12000, scoped, tag = 'internal scratch']
  #allocation2 [shape = 'f32[10,10,4]{2,1,0:T(8,128)}', space=vmem, size = 0x14000, scoped, tag = 'scratch operand']
  #allocation3 [shape = 'f32[10,10,8]{2,1,0:T(8,128)}', space=vmem, size = 0x14000, scoped, tag = 'scratch operand']
  %s0 = inlined_call_operand.vmem [shape: f32[2,8,2,8,2,4], index: 0, kind: input, shape index: {}]
  %s1 = inlined_call_operand.vmem [shape: f32[36,8], index: 1, kind: input, shape index: {}]
  %s2 = inlined_call_operand.vmem [shape: f32[2,8], index: 2, kind: input, shape index: {}]
  %s3 = inlined_call_operand.vmem [shape: f32[72,8], index: 3, kind: input, shape index: {}]
  %s4 = inlined_call_operand.vmem [shape: f32[2,8], index: 4, kind: input, shape index: {}]
  %s5 = inlined_call_operand.vmem [shape: f32[2,64,8], index: 5, kind: output, shape index: {}]
  %s6 = sld [smem:[#allocation0]]
  $region53: #{tpu_custom_call.1} parent=0
    _
  %s8 = ssub.s32 1, %s6
  %s9 = scalar_select 0, %s8, %s6
  loop: start=0, step=1, limit=4
  $region2: #{tpu_custom_call.1} parent=0 // loop_pre_header
    _
  $region3: #{tpu_custom_call.1} parent=0 // loop_header
    %s11 = sphi 0, %s15
    %p12 = scmp.ge.s32.totalorder %s11, 4
    %s21 = sphi 0, %s23
    %s24 = sphi 0, %s21
    %s25 = sphi 0, %s24
    %s41 = sphi 0, %s25
    %s45 = sphi 0, %s45
    %s47 = sphi 0, %s45
    %s48 = sphi 0, %s47
    %s62 = sphi 0, %s48
    %s66 = sphi 0, %s66
    %s68 = sphi 0, %s66
    %s69 = sphi 0, %s68
    %s83 = sphi 0, %s69
    %s87 = sphi 0, %s87
    %s89 = sphi 0, %s87
    %s90 = sphi 0, %s89
    %s104 = sphi 0, %s90
    %s108 = sphi 0, %s108
    %s110 = sphi 0, %s108
    %s111 = sphi 0, %s110
    %s125 = sphi 0, %s111
    %s131 = sphi 0, %s133
    %s134 = sphi 0, %s131
    %s135 = sphi 0, %s134
    %s151 = sphi 0, %s135
  $region4: #{tpu_custom_call.1} parent=0 // loop_header_branch
    %14 = sbr.rel (%p12) target = $region8
  $region5: #{tpu_custom_call.1} parent=0 // loop_body
    %s16 = ssub.s32 %s11, 1
    %s17 = ssub.s32 %s11, 2
    %s18 = sadd.s32 %s11, 1
    %s19 = ssub.s32 %s11, %s18
    %p20 = scmp.eq.s32.totalorder %s19, 0
    %s22 = sadd.s32 %s21, 1
    %s23 = scalar_select %p20, %s21, %s22
    %p26 = pneg %p20
    %p27 = scmp.eq.s32.totalorder %s11, 1
    %p28 = por %p26, %p27
    %p29 = scmp.ne.s32.totalorder %s21, %s24
    %p30 = scmp.eq.s32.totalorder %s11, 0
    %p31 = por %p29, %p30
    %p32 = scmp.ne.s32.totalorder %s21, %s24
    %p33 = scmp.eq.s32.totalorder %s16, 1
    %p34 = por %p32, %p33
    %p35 = scmp.ne.s32.totalorder %s24, %s25
    %p36 = scmp.eq.s32.totalorder %s16, 0
    %p37 = por %p35, %p36
    %p38 = scmp.ne.s32.totalorder %s24, %s25
    %p39 = scmp.eq.s32.totalorder %s17, 1
    %p40 = por %p38, %p39
    %p42 = scmp.ne.s32.totalorder %s25, %s41
    %p43 = scmp.eq.s32.totalorder %s17, 0
    %p44 = por %p42, %p43
    %s46 = sadd.s32 %s45, 1
    %p49 = scmp.eq.s32.totalorder %s11, 1
    %p50 = scmp.ne.s32.totalorder %s45, %s47
    %p51 = scmp.eq.s32.totalorder %s11, 0
    %p52 = por %p50, %p51
    %p53 = scmp.ne.s32.totalorder %s45, %s47
    %p54 = scmp.eq.s32.totalorder %s16, 1
    %p55 = por %p53, %p54
    %p56 = scmp.ne.s32.totalorder %s47, %s48
    %p57 = scmp.eq.s32.totalorder %s16, 0
    %p58 = por %p56, %p57
    %p59 = scmp.ne.s32.totalorder %s47, %s48
    %p60 = scmp.eq.s32.totalorder %s17, 1
    %p61 = por %p59, %p60
    %p63 = scmp.ne.s32.totalorder %s48, %s62
    %p64 = scmp.eq.s32.totalorder %s17, 0
    %p65 = por %p63, %p64
    %s67 = sadd.s32 %s66, 1
    %p70 = scmp.eq.s32.totalorder %s11, 1
    %p71 = scmp.ne.s32.totalorder %s66, %s68
    %p72 = scmp.eq.s32.totalorder %s11, 0
    %p73 = por %p71, %p72
    %p74 = scmp.ne.s32.totalorder %s66, %s68
    %p75 = scmp.eq.s32.totalorder %s16, 1
    %p76 = por %p74, %p75
    %p77 = scmp.ne.s32.totalorder %s68, %s69
    %p78 = scmp.eq.s32.totalorder %s16, 0
    %p79 = por %p77, %p78
    %p80 = scmp.ne.s32.totalorder %s68, %s69
    %p81 = scmp.eq.s32.totalorder %s17, 1
    %p82 = por %p80, %p81
    %p84 = scmp.ne.s32.totalorder %s69, %s83
    %p85 = scmp.eq.s32.totalorder %s17, 0
    %p86 = por %p84, %p85
    %s88 = sadd.s32 %s87, 1
    %p91 = scmp.eq.s32.totalorder %s11, 1
    %p92 = scmp.ne.s32.totalorder %s87, %s89
    %p93 = scmp.eq.s32.totalorder %s11, 0
    %p94 = por %p92, %p93
    %p95 = scmp.ne.s32.totalorder %s87, %s89
    %p96 = scmp.eq.s32.totalorder %s16, 1
    %p97 = por %p95, %p96
    %p98 = scmp.ne.s32.totalorder %s89, %s90
    %p99 = scmp.eq.s32.totalorder %s16, 0
    %p100 = por %p98, %p99
    %p101 = scmp.ne.s32.totalorder %s89, %s90
    %p102 = scmp.eq.s32.totalorder %s17, 1
    %p103 = por %p101, %p102
    %p105 = scmp.ne.s32.totalorder %s90, %s104
    %p106 = scmp.eq.s32.totalorder %s17, 0
    %p107 = por %p105, %p106
    %s109 = sadd.s32 %s108, 1
    %p112 = scmp.eq.s32.totalorder %s11, 1
    %p113 = scmp.ne.s32.totalorder %s108, %s110
    %p114 = scmp.eq.s32.totalorder %s11, 0
    %p115 = por %p113, %p114
    %p116 = scmp.ne.s32.totalorder %s108, %s110
    %p117 = scmp.eq.s32.totalorder %s16, 1
    %p118 = por %p116, %p117
    %p119 = scmp.ne.s32.totalorder %s110, %s111
    %p120 = scmp.eq.s32.totalorder %s16, 0
    %p121 = por %p119, %p120
    %p122 = scmp.ne.s32.totalorder %s110, %s111
    %p123 = scmp.eq.s32.totalorder %s17, 1
    %p124 = por %p122, %p123
    %p126 = scmp.ne.s32.totalorder %s111, %s125
    %p127 = scmp.eq.s32.totalorder %s17, 0
    %p128 = por %p126, %p127
    %s129 = ssub.s32 %s11, %s18
    %p130 = scmp.eq.s32.totalorder %s129, 0
    %s132 = sadd.s32 %s131, 1
    %s133 = scalar_select %p130, %s131, %s132
    %p136 = pneg %p130
    %p137 = scmp.eq.s32.totalorder %s11, 1
    %p138 = por %p136, %p137
    %p139 = scmp.ne.s32.totalorder %s131, %s134
    %p140 = scmp.eq.s32.totalorder %s11, 0
    %p141 = por %p139, %p140
    %p142 = scmp.ne.s32.totalorder %s131, %s134
    %p143 = scmp.eq.s32.totalorder %s16, 1
    %p144 = por %p142, %p143
    %p145 = scmp.ne.s32.totalorder %s134, %s135
    %p146 = scmp.eq.s32.totalorder %s16, 0
    %p147 = por %p145, %p146
    %p148 = scmp.ne.s32.totalorder %s134, %s135
    %p149 = scmp.eq.s32.totalorder %s17, 1
    %p150 = por %p148, %p149
    %p152 = scmp.ne.s32.totalorder %s135, %s151
    %p153 = scmp.eq.s32.totalorder %s17, 0
    %p154 = por %p152, %p153
    %p155 = scmp.le.s32.totalorder 1, %s11
    %p156 = scmp.lt.s32.totalorder %s11, 3
    %p157 = pnand %p155, %p156
    %p158 = pneg %p157
    // Predicated region
    $region9: #{tpu_custom_call.1} parent=5 // pred_check
      _
    $region10: #{tpu_custom_call.1} parent=5 // pred_check_branch
      %160 = sbr.rel (%p157) target = $region12
    $region11: #{tpu_custom_call.1} parent=5 // pred_region
      %s161 = ssub.s32 %s11, 1
      // Predicated region
      $region13: #{tpu_custom_call.1} parent=11 // pred_check
        %p162 = pneg %p58
      $region14: #{tpu_custom_call.1} parent=11 // pred_check_branch
        %164 = sbr.rel (%p162) target = $region16
      $region15: #{tpu_custom_call.1} parent=11 // pred_region
        _
      $region16: #{tpu_custom_call.1} parent=11 // pred_fallthru
        _
      // Predicated region
      $region17: #{tpu_custom_call.1} parent=11 // pred_check
        %p165 = pneg %p79
      $region18: #{tpu_custom_call.1} parent=11 // pred_check_branch
        %167 = sbr.rel (%p165) target = $region20
      $region19: #{tpu_custom_call.1} parent=11 // pred_region
        _
      $region20: #{tpu_custom_call.1} parent=11 // pred_fallthru
        _
      // Predicated region
      $region21: #{tpu_custom_call.1} parent=11 // pred_check
        %p168 = pneg %p100
      $region22: #{tpu_custom_call.1} parent=11 // pred_check_branch
        %170 = sbr.rel (%p168) target = $region24
      $region23: #{tpu_custom_call.1} parent=11 // pred_region
        _
      $region24: #{tpu_custom_call.1} parent=11 // pred_fallthru
        _
      // Predicated region
      $region25: #{tpu_custom_call.1} parent=11 // pred_check
        %p171 = pneg %p121
      $region26: #{tpu_custom_call.1} parent=11 // pred_check_branch
        %173 = sbr.rel (%p171) target = $region28
      $region27: #{tpu_custom_call.1} parent=11 // pred_region
        _
      $region28: #{tpu_custom_call.1} parent=11 // pred_fallthru
        _
    $region12: #{tpu_custom_call.1} parent=5 // pred_fallthru
      _
    %p174 = scmp.lt.s32.totalorder %s11, 2
    // Predicated region
    $region29: #{tpu_custom_call.1} parent=5 // pred_check
      %p175 = pneg %p174
    $region30: #{tpu_custom_call.1} parent=5 // pred_check_branch
      %177 = sbr.rel (%p175) target = $region32
    $region31: #{tpu_custom_call.1} parent=5 // pred_region
      // Predicated region
      $region33: #{tpu_custom_call.1} parent=31 // pred_check
        %p178 = pneg %p31
      $region34: #{tpu_custom_call.1} parent=31 // pred_check_branch
        %180 = sbr.rel (%p178) target = $region36
      $region35: #{tpu_custom_call.1} parent=31 // pred_region
        %p181 = scmp.lt.s32.totalorder %s11, 1
        %s182 = scalar_select %p181, %s11, 1
        %s183 = smul.addr %s182, 128
        %s184 = smul.addr %s183, 2
        %s185 = scalar_lea.vmem %s0, %s184
      $region36: #{tpu_custom_call.1} parent=31 // pred_fallthru
        _
    $region32: #{tpu_custom_call.1} parent=5 // pred_fallthru
      _
    %p186 = scmp.le.s32.totalorder 1, %s11
    %p187 = scmp.lt.s32.totalorder %s11, 3
    %p188 = pnand %p186, %p187
    %p189 = pneg %p188
    // Predicated region
    $region37: #{tpu_custom_call.1} parent=5 // pred_check
      _
    $region38: #{tpu_custom_call.1} parent=5 // pred_check_branch
      %191 = sbr.rel (%p188) target = $region40
    $region39: #{tpu_custom_call.1} parent=5 // pred_region
      %s192 = ssub.s32 %s11, 1
      %p193 = scmp.lt.s32.totalorder %s16, 1
      %s194 = scalar_select %p193, %s16, 1
      %s195 = smul.addr %s194, 128
      %s196 = smul.addr %s195, 2
      %s197 = scalar_lea.vmem %s0, %s196
      %p198 = pneg %p37
      %p199 = pneg %p34
      %p200 = pneg %p58
      %p201 = pneg %p55
      %p202 = pneg %p79
      %p203 = pneg %p76
      %p204 = pneg %p100
      %p205 = pneg %p97
      %p206 = pneg %p121
      %p207 = pneg %p118
      %p208 = pneg %p147
      %p209 = pneg %p144
      %p210 = scmp.lt.s32.totalorder %s16, 1
      %s211 = scalar_select %p210, %s16, 1
      %s212 = smul.addr %s211, 8
      %s213 = smul.addr %s212, 8
      %s214 = scalar_lea.vmem %s5, %s213
      %p215 = scmp.lt.s32.totalorder %s16, 1
      %s216 = scalar_select %p215, %s16, 1
      %s217 = smul.addr %s216, 128
      %s218 = smul.addr %s217, 2
      %s219 = scalar_lea.vmem %s0, %s218
      %p220 = scmp.lt.s32.totalorder %s16, 1
      %s221 = scalar_select %p220, %s16, 1
      %s222 = smul.addr %s221, 8
      %s223 = smul.addr %s222, 8
      %s224 = scalar_lea.vmem %s5, %s223
      %v225 = vld [vmem:[%s219] sm:$0x3]
      %v226 = vld [vmem:[%s219 + $0x2] sm:$0x3]
      %v227 = vld [vmem:[%s219 + $0x4] sm:$0x3]
      %v228 = vld [vmem:[%s219 + $0x6] sm:$0x3]
      %v229 = vld [vmem:[%s219 + $0x8] sm:$0x3]
      %v230 = vld [vmem:[%s219 + $0xa] sm:$0x3]
      %v231 = vld [vmem:[%s219 + $0xc] sm:$0x3]
      %v232 = vld [vmem:[%s219 + $0xe] sm:$0x3]
      %v233 = vld [vmem:[%s219 + $0x10] sm:$0x3]
      %v234 = vld [vmem:[%s219 + $0x12] sm:$0x3]
      %v235 = vld [vmem:[%s219 + $0x14] sm:$0x3]
      %v236 = vld [vmem:[%s219 + $0x16] sm:$0x3]
      %v237 = vld [vmem:[%s219 + $0x18] sm:$0x3]
      %v238 = vld [vmem:[%s219 + $0x1a] sm:$0x3]
      %v239 = vld [vmem:[%s219 + $0x1c] sm:$0x3]
      %v240 = vld [vmem:[%s219 + $0x1e] sm:$0x3]
      %v241 = vld [vmem:[%s219 + $0x20] sm:$0x3]
      %v242 = vld [vmem:[%s219 + $0x22] sm:$0x3]
      %v243 = vld [vmem:[%s219 + $0x24] sm:$0x3]
      %v244 = vld [vmem:[%s219 + $0x26] sm:$0x3]
      %v245 = vld [vmem:[%s219 + $0x28] sm:$0x3]
      %v246 = vld [vmem:[%s219 + $0x2a] sm:$0x3]
      %v247 = vld [vmem:[%s219 + $0x2c] sm:$0x3]
      %v248 = vld [vmem:[%s219 + $0x2e] sm:$0x3]
      %v249 = vld [vmem:[%s219 + $0x30] sm:$0x3]
      %v250 = vld [vmem:[%s219 + $0x32] sm:$0x3]
      %v251 = vld [vmem:[%s219 + $0x34] sm:$0x3]
      %v252 = vld [vmem:[%s219 + $0x36] sm:$0x3]
      %v253 = vld [vmem:[%s219 + $0x38] sm:$0x3]
      %v254 = vld [vmem:[%s219 + $0x3a] sm:$0x3]
      %v255 = vld [vmem:[%s219 + $0x3c] sm:$0x3]
      %v256 = vld [vmem:[%s219 + $0x3e] sm:$0x3]
      %v257 = vld [vmem:[%s219 + $0x40] sm:$0x3]
      %v258 = vld [vmem:[%s219 + $0x42] sm:$0x3]
      %v259 = vld [vmem:[%s219 + $0x44] sm:$0x3]
      %v260 = vld [vmem:[%s219 + $0x46] sm:$0x3]
      %v261 = vld [vmem:[%s219 + $0x48] sm:$0x3]
      %v262 = vld [vmem:[%s219 + $0x4a] sm:$0x3]
      %v263 = vld [vmem:[%s219 + $0x4c] sm:$0x3]
      %v264 = vld [vmem:[%s219 + $0x4e] sm:$0x3]
      %v265 = vld [vmem:[%s219 + $0x50] sm:$0x3]
      %v266 = vld [vmem:[%s219 + $0x52] sm:$0x3]
      %v267 = vld [vmem:[%s219 + $0x54] sm:$0x3]
      %v268 = vld [vmem:[%s219 + $0x56] sm:$0x3]
      %v269 = vld [vmem:[%s219 + $0x58] sm:$0x3]
      %v270 = vld [vmem:[%s219 + $0x5a] sm:$0x3]
      %v271 = vld [vmem:[%s219 + $0x5c] sm:$0x3]
      %v272 = vld [vmem:[%s219 + $0x5e] sm:$0x3]
      %v273 = vld [vmem:[%s219 + $0x60] sm:$0x3]
      %v274 = vld [vmem:[%s219 + $0x62] sm:$0x3]
      %v275 = vld [vmem:[%s219 + $0x64] sm:$0x3]
      %v276 = vld [vmem:[%s219 + $0x66] sm:$0x3]
      %v277 = vld [vmem:[%s219 + $0x68] sm:$0x3]
      %v278 = vld [vmem:[%s219 + $0x6a] sm:$0x3]
      %v279 = vld [vmem:[%s219 + $0x6c] sm:$0x3]
      %v280 = vld [vmem:[%s219 + $0x6e] sm:$0x3]
      %v281 = vld [vmem:[%s219 + $0x70] sm:$0x3]
      %v282 = vld [vmem:[%s219 + $0x72] sm:$0x3]
      %v283 = vld [vmem:[%s219 + $0x74] sm:$0x3]
      %v284 = vld [vmem:[%s219 + $0x76] sm:$0x3]
      %v285 = vld [vmem:[%s219 + $0x78] sm:$0x3]
      %v286 = vld [vmem:[%s219 + $0x7a] sm:$0x3]
      %v287 = vld [vmem:[%s219 + $0x7c] sm:$0x3]
      %v288 = vld [vmem:[%s219 + $0x7e] sm:$0x3]
      %v289 = vld [vmem:[%s219 + $0x80] sm:$0x3]
      %v290 = vld [vmem:[%s219 + $0x82] sm:$0x3]
      %v291 = vld [vmem:[%s219 + $0x84] sm:$0x3]
      %v292 = vld [vmem:[%s219 + $0x86] sm:$0x3]
      %v293 = vld [vmem:[%s219 + $0x88] sm:$0x3]
      %v294 = vld [vmem:[%s219 + $0x8a] sm:$0x3]
      %v295 = vld [vmem:[%s219 + $0x8c] sm:$0x3]
      %v296 = vld [vmem:[%s219 + $0x8e] sm:$0x3]
      %v297 = vld [vmem:[%s219 + $0x90] sm:$0x3]
      %v298 = vld [vmem:[%s219 + $0x92] sm:$0x3]
      %v299 = vld [vmem:[%s219 + $0x94] sm:$0x3]
      %v300 = vld [vmem:[%s219 + $0x96] sm:$0x3]
      %v301 = vld [vmem:[%s219 + $0x98] sm:$0x3]
      %v302 = vld [vmem:[%s219 + $0x9a] sm:$0x3]
      %v303 = vld [vmem:[%s219 + $0x9c] sm:$0x3]
      %v304 = vld [vmem:[%s219 + $0x9e] sm:$0x3]
      %v305 = vld [vmem:[%s219 + $0xa0] sm:$0x3]
      %v306 = vld [vmem:[%s219 + $0xa2] sm:$0x3]
      %v307 = vld [vmem:[%s219 + $0xa4] sm:$0x3]
      %v308 = vld [vmem:[%s219 + $0xa6] sm:$0x3]
      %v309 = vld [vmem:[%s219 + $0xa8] sm:$0x3]
      %v310 = vld [vmem:[%s219 + $0xaa] sm:$0x3]
      %v311 = vld [vmem:[%s219 + $0xac] sm:$0x3]
      %v312 = vld [vmem:[%s219 + $0xae] sm:$0x3]
      %v313 = vld [vmem:[%s219 + $0xb0] sm:$0x3]
      %v314 = vld [vmem:[%s219 + $0xb2] sm:$0x3]
      %v315 = vld [vmem:[%s219 + $0xb4] sm:$0x3]
      %v316 = vld [vmem:[%s219 + $0xb6] sm:$0x3]
      %v317 = vld [vmem:[%s219 + $0xb8] sm:$0x3]
      %v318 = vld [vmem:[%s219 + $0xba] sm:$0x3]
      %v319 = vld [vmem:[%s219 + $0xbc] sm:$0x3]
      %v320 = vld [vmem:[%s219 + $0xbe] sm:$0x3]
      %v321 = vld [vmem:[%s219 + $0xc0] sm:$0x3]
      %v322 = vld [vmem:[%s219 + $0xc2] sm:$0x3]
      %v323 = vld [vmem:[%s219 + $0xc4] sm:$0x3]
      %v324 = vld [vmem:[%s219 + $0xc6] sm:$0x3]
      %v325 = vld [vmem:[%s219 + $0xc8] sm:$0x3]
      %v326 = vld [vmem:[%s219 + $0xca] sm:$0x3]
      %v327 = vld [vmem:[%s219 + $0xcc] sm:$0x3]
      %v328 = vld [vmem:[%s219 + $0xce] sm:$0x3]
      %v329 = vld [vmem:[%s219 + $0xd0] sm:$0x3]
      %v330 = vld [vmem:[%s219 + $0xd2] sm:$0x3]
      %v331 = vld [vmem:[%s219 + $0xd4] sm:$0x3]
      %v332 = vld [vmem:[%s219 + $0xd6] sm:$0x3]
      %v333 = vld [vmem:[%s219 + $0xd8] sm:$0x3]
      %v334 = vld [vmem:[%s219 + $0xda] sm:$0x3]
      %v335 = vld [vmem:[%s219 + $0xdc] sm:$0x3]
      %v336 = vld [vmem:[%s219 + $0xde] sm:$0x3]
      %v337 = vld [vmem:[%s219 + $0xe0] sm:$0x3]
      %v338 = vld [vmem:[%s219 + $0xe2] sm:$0x3]
      %v339 = vld [vmem:[%s219 + $0xe4] sm:$0x3]
      %v340 = vld [vmem:[%s219 + $0xe6] sm:$0x3]
      %v341 = vld [vmem:[%s219 + $0xe8] sm:$0x3]
      %v342 = vld [vmem:[%s219 + $0xea] sm:$0x3]
      %v343 = vld [vmem:[%s219 + $0xec] sm:$0x3]
      %v344 = vld [vmem:[%s219 + $0xee] sm:$0x3]
      %v345 = vld [vmem:[%s219 + $0xf0] sm:$0x3]
      %v346 = vld [vmem:[%s219 + $0xf2] sm:$0x3]
      %v347 = vld [vmem:[%s219 + $0xf4] sm:$0x3]
      %v348 = vld [vmem:[%s219 + $0xf6] sm:$0x3]
      %v349 = vld [vmem:[%s219 + $0xf8] sm:$0x3]
      %v350 = vld [vmem:[%s219 + $0xfa] sm:$0x3]
      %v351 = vld [vmem:[%s219 + $0xfc] sm:$0x3]
      %v352 = vld [vmem:[%s219 + $0xfe] sm:$0x3]
      %v353 = vmax.f32 %v225, %v233
      %v354 = vmax.f32 %v226, %v234
      %v355 = vmax.f32 %v227, %v235
      %v356 = vmax.f32 %v228, %v236
      %v357 = vmax.f32 %v229, %v237
      %v358 = vmax.f32 %v230, %v238
      %v359 = vmax.f32 %v231, %v239
      %v360 = vmax.f32 %v232, %v240
      %v361 = vmax.f32 %v241, %v249
      %v362 = vmax.f32 %v242, %v250
      %v363 = vmax.f32 %v243, %v251
      %v364 = vmax.f32 %v244, %v252
      %v365 = vmax.f32 %v245, %v253
      %v366 = vmax.f32 %v246, %v254
      %v367 = vmax.f32 %v247, %v255
      %v368 = vmax.f32 %v248, %v256
      %v369 = vmax.f32 %v257, %v265
      %v370 = vmax.f32 %v258, %v266
      %v371 = vmax.f32 %v259, %v267
      %v372 = vmax.f32 %v260, %v268
      %v373 = vmax.f32 %v261, %v269
      %v374 = vmax.f32 %v262, %v270
      %v375 = vmax.f32 %v263, %v271
      %v376 = vmax.f32 %v264, %v272
      %v377 = vmax.f32 %v273, %v281
      %v378 = vmax.f32 %v274, %v282
      %v379 = vmax.f32 %v275, %v283
      %v380 = vmax.f32 %v276, %v284
      %v381 = vmax.f32 %v277, %v285
      %v382 = vmax.f32 %v278, %v286
      %v383 = vmax.f32 %v279, %v287
      %v384 = vmax.f32 %v280, %v288
      %v385 = vmax.f32 %v289, %v297
      %v386 = vmax.f32 %v290, %v298
      %v387 = vmax.f32 %v291, %v299
      %v388 = vmax.f32 %v292, %v300
      %v389 = vmax.f32 %v293, %v301
      %v390 = vmax.f32 %v294, %v302
      %v391 = vmax.f32 %v295, %v303
      %v392 = vmax.f32 %v296, %v304
      %v393 = vmax.f32 %v305, %v313
      %v394 = vmax.f32 %v306, %v314
      %v395 = vmax.f32 %v307, %v315
      %v396 = vmax.f32 %v308, %v316
      %v397 = vmax.f32 %v309, %v317
      %v398 = vmax.f32 %v310, %v318
      %v399 = vmax.f32 %v311, %v319
      %v400 = vmax.f32 %v312, %v320
      %v401 = vmax.f32 %v321, %v329
      %v402 = vmax.f32 %v322, %v330
      %v403 = vmax.f32 %v323, %v331
      %v404 = vmax.f32 %v324, %v332
      %v405 = vmax.f32 %v325, %v333
      %v406 = vmax.f32 %v326, %v334
      %v407 = vmax.f32 %v327, %v335
      %v408 = vmax.f32 %v328, %v336
      %v409 = vmax.f32 %v337, %v345
      %v410 = vmax.f32 %v338, %v346
      %v411 = vmax.f32 %v339, %v347
      %v412 = vmax.f32 %v340, %v348
      %v413 = vmax.f32 %v341, %v349
      %v414 = vmax.f32 %v342, %v350
      %v415 = vmax.f32 %v343, %v351
      %v416 = vmax.f32 %v344, %v352
      %vm417 = vcmask 25600
      %v418 = vsel %vm417, %v353, -inf
      %v419 = vrot.slane %v418, 4
      %v420 = vmax.f32 %v418, %v419
      %v421 = vrot.slane %v420, 2
      %v422 = vmax.f32 %v420, %v421
      %v423 = vrot.slane %v422, 1
      %v424 = vmax.f32 %v422, %v423
      %v425 = vsel %vm417, %v354, -inf
      %v426 = vrot.slane %v425, 4
      %v427 = vmax.f32 %v425, %v426
      %v428 = vrot.slane %v427, 2
      %v429 = vmax.f32 %v427, %v428
      %v430 = vrot.slane %v429, 1
      %v431 = vmax.f32 %v429, %v430
      %v432 = vsel %vm417, %v355, -inf
      %v433 = vrot.slane %v432, 4
      %v434 = vmax.f32 %v432, %v433
      %v435 = vrot.slane %v434, 2
      %v436 = vmax.f32 %v434, %v435
      %v437 = vrot.slane %v436, 1
      %v438 = vmax.f32 %v436, %v437
      %v439 = vsel %vm417, %v356, -inf
      %v440 = vrot.slane %v439, 4
      %v441 = vmax.f32 %v439, %v440
      %v442 = vrot.slane %v441, 2
      %v443 = vmax.f32 %v441, %v442
      %v444 = vrot.slane %v443, 1
      %v445 = vmax.f32 %v443, %v444
      %v446 = vsel %vm417, %v357, -inf
      %v447 = vrot.slane %v446, 4
      %v448 = vmax.f32 %v446, %v447
      %v449 = vrot.slane %v448, 2
      %v450 = vmax.f32 %v448, %v449
      %v451 = vrot.slane %v450, 1
      %v452 = vmax.f32 %v450, %v451
      %v453 = vsel %vm417, %v358, -inf
      %v454 = vrot.slane %v453, 4
      %v455 = vmax.f32 %v453, %v454
      %v456 = vrot.slane %v455, 2
      %v457 = vmax.f32 %v455, %v456
      %v458 = vrot.slane %v457, 1
      %v459 = vmax.f32 %v457, %v458
      %v460 = vsel %vm417, %v359, -inf
      %v461 = vrot.slane %v460, 4
      %v462 = vmax.f32 %v460, %v461
      %v463 = vrot.slane %v462, 2
      %v464 = vmax.f32 %v462, %v463
      %v465 = vrot.slane %v464, 1
      %v466 = vmax.f32 %v464, %v465
      %v467 = vsel %vm417, %v360, -inf
      %v468 = vrot.slane %v467, 4
      %v469 = vmax.f32 %v467, %v468
      %v470 = vrot.slane %v469, 2
      %v471 = vmax.f32 %v469, %v470
      %v472 = vrot.slane %v471, 1
      %v473 = vmax.f32 %v471, %v472
      %v474 = vsel %vm417, %v361, -inf
      %v475 = vrot.slane %v474, 4
      %v476 = vmax.f32 %v474, %v475
      %v477 = vrot.slane %v476, 2
      %v478 = vmax.f32 %v476, %v477
      %v479 = vrot.slane %v478, 1
      %v480 = vmax.f32 %v478, %v479
      %v481 = vsel %vm417, %v362, -inf
      %v482 = vrot.slane %v481, 4
      %v483 = vmax.f32 %v481, %v482
      %v484 = vrot.slane %v483, 2
      %v485 = vmax.f32 %v483, %v484
      %v486 = vrot.slane %v485, 1
      %v487 = vmax.f32 %v485, %v486
      %v488 = vsel %vm417, %v363, -inf
      %v489 = vrot.slane %v488, 4
      %v490 = vmax.f32 %v488, %v489
      %v491 = vrot.slane %v490, 2
      %v492 = vmax.f32 %v490, %v491
      %v493 = vrot.slane %v492, 1
      %v494 = vmax.f32 %v492, %v493
      %v495 = vsel %vm417, %v364, -inf
      %v496 = vrot.slane %v495, 4
      %v497 = vmax.f32 %v495, %v496
      %v498 = vrot.slane %v497, 2
      %v499 = vmax.f32 %v497, %v498
      %v500 = vrot.slane %v499, 1
      %v501 = vmax.f32 %v499, %v500
      %v502 = vsel %vm417, %v365, -inf
      %v503 = vrot.slane %v502, 4
      %v504 = vmax.f32 %v502, %v503
      %v505 = vrot.slane %v504, 2
      %v506 = vmax.f32 %v504, %v505
      %v507 = vrot.slane %v506, 1
      %v508 = vmax.f32 %v506, %v507
      %v509 = vsel %vm417, %v366, -inf
      %v510 = vrot.slane %v509, 4
      %v511 = vmax.f32 %v509, %v510
      %v512 = vrot.slane %v511, 2
      %v513 = vmax.f32 %v511, %v512
      %v514 = vrot.slane %v513, 1
      %v515 = vmax.f32 %v513, %v514
      %v516 = vsel %vm417, %v367, -inf
      %v517 = vrot.slane %v516, 4
      %v518 = vmax.f32 %v516, %v517
      %v519 = vrot.slane %v518, 2
      %v520 = vmax.f32 %v518, %v519
      %v521 = vrot.slane %v520, 1
      %v522 = vmax.f32 %v520, %v521
      %v523 = vsel %vm417, %v368, -inf
      %v524 = vrot.slane %v523, 4
      %v525 = vmax.f32 %v523, %v524
      %v526 = vrot.slane %v525, 2
      %v527 = vmax.f32 %v525, %v526
      %v528 = vrot.slane %v527, 1
      %v529 = vmax.f32 %v527, %v528
      %v530 = vsel %vm417, %v369, -inf
      %v531 = vrot.slane %v530, 4
      %v532 = vmax.f32 %v530, %v531
      %v533 = vrot.slane %v532, 2
      %v534 = vmax.f32 %v532, %v533
      %v535 = vrot.slane %v534, 1
      %v536 = vmax.f32 %v534, %v535
      %v537 = vsel %vm417, %v370, -inf
      %v538 = vrot.slane %v537, 4
      %v539 = vmax.f32 %v537, %v538
      %v540 = vrot.slane %v539, 2
      %v541 = vmax.f32 %v539, %v540
      %v542 = vrot.slane %v541, 1
      %v543 = vmax.f32 %v541, %v542
      %v544 = vsel %vm417, %v371, -inf
      %v545 = vrot.slane %v544, 4
      %v546 = vmax.f32 %v544, %v545
      %v547 = vrot.slane %v546, 2
      %v548 = vmax.f32 %v546, %v547
      %v549 = vrot.slane %v548, 1
      %v550 = vmax.f32 %v548, %v549
      %v551 = vsel %vm417, %v372, -inf
      %v552 = vrot.slane %v551, 4
      %v553 = vmax.f32 %v551, %v552
      %v554 = vrot.slane %v553, 2
      %v555 = vmax.f32 %v553, %v554
      %v556 = vrot.slane %v555, 1
      %v557 = vmax.f32 %v555, %v556
      %v558 = vsel %vm417, %v373, -inf
      %v559 = vrot.slane %v558, 4
      %v560 = vmax.f32 %v558, %v559
      %v561 = vrot.slane %v560, 2
      %v562 = vmax.f32 %v560, %v561
      %v563 = vrot.slane %v562, 1
      %v564 = vmax.f32 %v562, %v563
      %v565 = vsel %vm417, %v374, -inf
      %v566 = vrot.slane %v565, 4
      %v567 = vmax.f32 %v565, %v566
      %v568 = vrot.slane %v567, 2
      %v569 = vmax.f32 %v567, %v568
      %v570 = vrot.slane %v569, 1
      %v571 = vmax.f32 %v569, %v570
      %v572 = vsel %vm417, %v375, -inf
      %v573 = vrot.slane %v572, 4
      %v574 = vmax.f32 %v572, %v573
      %v575 = vrot.slane %v574, 2
      %v576 = vmax.f32 %v574, %v575
      %v577 = vrot.slane %v576, 1
      %v578 = vmax.f32 %v576, %v577
      %v579 = vsel %vm417, %v376, -inf
      %v580 = vrot.slane %v579, 4
      %v581 = vmax.f32 %v579, %v580
      %v582 = vrot.slane %v581, 2
      %v583 = vmax.f32 %v581, %v582
      %v584 = vrot.slane %v583, 1
      %v585 = vmax.f32 %v583, %v584
      %v586 = vsel %vm417, %v377, -inf
      %v587 = vrot.slane %v586, 4
      %v588 = vmax.f32 %v586, %v587
      %v589 = vrot.slane %v588, 2
      %v590 = vmax.f32 %v588, %v589
      %v591 = vrot.slane %v590, 1
      %v592 = vmax.f32 %v590, %v591
      %v593 = vsel %vm417, %v378, -inf
      %v594 = vrot.slane %v593, 4
      %v595 = vmax.f32 %v593, %v594
      %v596 = vrot.slane %v595, 2
      %v597 = vmax.f32 %v595, %v596
      %v598 = vrot.slane %v597, 1
      %v599 = vmax.f32 %v597, %v598
      %v600 = vsel %vm417, %v379, -inf
      %v601 = vrot.slane %v600, 4
      %v602 = vmax.f32 %v600, %v601
      %v603 = vrot.slane %v602, 2
      %v604 = vmax.f32 %v602, %v603
      %v605 = vrot.slane %v604, 1
      %v606 = vmax.f32 %v604, %v605
      %v607 = vsel %vm417, %v380, -inf
      %v608 = vrot.slane %v607, 4
      %v609 = vmax.f32 %v607, %v608
      %v610 = vrot.slane %v609, 2
      %v611 = vmax.f32 %v609, %v610
      %v612 = vrot.slane %v611, 1
      %v613 = vmax.f32 %v611, %v612
      %v614 = vsel %vm417, %v381, -inf
      %v615 = vrot.slane %v614, 4
      %v616 = vmax.f32 %v614, %v615
      %v617 = vrot.slane %v616, 2
      %v618 = vmax.f32 %v616, %v617
      %v619 = vrot.slane %v618, 1
      %v620 = vmax.f32 %v618, %v619
      %v621 = vsel %vm417, %v382, -inf
      %v622 = vrot.slane %v621, 4
      %v623 = vmax.f32 %v621, %v622
      %v624 = vrot.slane %v623, 2
      %v625 = vmax.f32 %v623, %v624
      %v626 = vrot.slane %v625, 1
      %v627 = vmax.f32 %v625, %v626
      %v628 = vsel %vm417, %v383, -inf
      %v629 = vrot.slane %v628, 4
      %v630 = vmax.f32 %v628, %v629
      %v631 = vrot.slane %v630, 2
      %v632 = vmax.f32 %v630, %v631
      %v633 = vrot.slane %v632, 1
      %v634 = vmax.f32 %v632, %v633
      %v635 = vsel %vm417, %v384, -inf
      %v636 = vrot.slane %v635, 4
      %v637 = vmax.f32 %v635, %v636
      %v638 = vrot.slane %v637, 2
      %v639 = vmax.f32 %v637, %v638
      %v640 = vrot.slane %v639, 1
      %v641 = vmax.f32 %v639, %v640
      %v642 = vsel %vm417, %v385, -inf
      %v643 = vrot.slane %v642, 4
      %v644 = vmax.f32 %v642, %v643
      %v645 = vrot.slane %v644, 2
      %v646 = vmax.f32 %v644, %v645
      %v647 = vrot.slane %v646, 1
      %v648 = vmax.f32 %v646, %v647
      %v649 = vsel %vm417, %v386, -inf
      %v650 = vrot.slane %v649, 4
      %v651 = vmax.f32 %v649, %v650
      %v652 = vrot.slane %v651, 2
      %v653 = vmax.f32 %v651, %v652
      %v654 = vrot.slane %v653, 1
      %v655 = vmax.f32 %v653, %v654
      %v656 = vsel %vm417, %v387, -inf
      %v657 = vrot.slane %v656, 4
      %v658 = vmax.f32 %v656, %v657
      %v659 = vrot.slane %v658, 2
      %v660 = vmax.f32 %v658, %v659
      %v661 = vrot.slane %v660, 1
      %v662 = vmax.f32 %v660, %v661
      %v663 = vsel %vm417, %v388, -inf
      %v664 = vrot.slane %v663, 4
      %v665 = vmax.f32 %v663, %v664
      %v666 = vrot.slane %v665, 2
      %v667 = vmax.f32 %v665, %v666
      %v668 = vrot.slane %v667, 1
      %v669 = vmax.f32 %v667, %v668
      %v670 = vsel %vm417, %v389, -inf
      %v671 = vrot.slane %v670, 4
      %v672 = vmax.f32 %v670, %v671
      %v673 = vrot.slane %v672, 2
      %v674 = vmax.f32 %v672, %v673
      %v675 = vrot.slane %v674, 1
      %v676 = vmax.f32 %v674, %v675
      %v677 = vsel %vm417, %v390, -inf
      %v678 = vrot.slane %v677, 4
      %v679 = vmax.f32 %v677, %v678
      %v680 = vrot.slane %v679, 2
      %v681 = vmax.f32 %v679, %v680
      %v682 = vrot.slane %v681, 1
      %v683 = vmax.f32 %v681, %v682
      %v684 = vsel %vm417, %v391, -inf
      %v685 = vrot.slane %v684, 4
      %v686 = vmax.f32 %v684, %v685
      %v687 = vrot.slane %v686, 2
      %v688 = vmax.f32 %v686, %v687
      %v689 = vrot.slane %v688, 1
      %v690 = vmax.f32 %v688, %v689
      %v691 = vsel %vm417, %v392, -inf
      %v692 = vrot.slane %v691, 4
      %v693 = vmax.f32 %v691, %v692
      %v694 = vrot.slane %v693, 2
      %v695 = vmax.f32 %v693, %v694
      %v696 = vrot.slane %v695, 1
      %v697 = vmax.f32 %v695, %v696
      %v698 = vsel %vm417, %v393, -inf
      %v699 = vrot.slane %v698, 4
      %v700 = vmax.f32 %v698, %v699
      %v701 = vrot.slane %v700, 2
      %v702 = vmax.f32 %v700, %v701
      %v703 = vrot.slane %v702, 1
      %v704 = vmax.f32 %v702, %v703
      %v705 = vsel %vm417, %v394, -inf
      %v706 = vrot.slane %v705, 4
      %v707 = vmax.f32 %v705, %v706
      %v708 = vrot.slane %v707, 2
      %v709 = vmax.f32 %v707, %v708
      %v710 = vrot.slane %v709, 1
      %v711 = vmax.f32 %v709, %v710
      %v712 = vsel %vm417, %v395, -inf
      %v713 = vrot.slane %v712, 4
      %v714 = vmax.f32 %v712, %v713
      %v715 = vrot.slane %v714, 2
      %v716 = vmax.f32 %v714, %v715
      %v717 = vrot.slane %v716, 1
      %v718 = vmax.f32 %v716, %v717
      %v719 = vsel %vm417, %v396, -inf
      %v720 = vrot.slane %v719, 4
      %v721 = vmax.f32 %v719, %v720
      %v722 = vrot.slane %v721, 2
      %v723 = vmax.f32 %v721, %v722
      %v724 = vrot.slane %v723, 1
      %v725 = vmax.f32 %v723, %v724
      %v726 = vsel %vm417, %v397, -inf
      %v727 = vrot.slane %v726, 4
      %v728 = vmax.f32 %v726, %v727
      %v729 = vrot.slane %v728, 2
      %v730 = vmax.f32 %v728, %v729
      %v731 = vrot.slane %v730, 1
      %v732 = vmax.f32 %v730, %v731
      %v733 = vsel %vm417, %v398, -inf
      %v734 = vrot.slane %v733, 4
      %v735 = vmax.f32 %v733, %v734
      %v736 = vrot.slane %v735, 2
      %v737 = vmax.f32 %v735, %v736
      %v738 = vrot.slane %v737, 1
      %v739 = vmax.f32 %v737, %v738
      %v740 = vsel %vm417, %v399, -inf
      %v741 = vrot.slane %v740, 4
      %v742 = vmax.f32 %v740, %v741
      %v743 = vrot.slane %v742, 2
      %v744 = vmax.f32 %v742, %v743
      %v745 = vrot.slane %v744, 1
      %v746 = vmax.f32 %v744, %v745
      %v747 = vsel %vm417, %v400, -inf
      %v748 = vrot.slane %v747, 4
      %v749 = vmax.f32 %v747, %v748
      %v750 = vrot.slane %v749, 2
      %v751 = vmax.f32 %v749, %v750
      %v752 = vrot.slane %v751, 1
      %v753 = vmax.f32 %v751, %v752
      %v754 = vsel %vm417, %v401, -inf
      %v755 = vrot.slane %v754, 4
      %v756 = vmax.f32 %v754, %v755
      %v757 = vrot.slane %v756, 2
      %v758 = vmax.f32 %v756, %v757
      %v759 = vrot.slane %v758, 1
      %v760 = vmax.f32 %v758, %v759
      %v761 = vsel %vm417, %v402, -inf
      %v762 = vrot.slane %v761, 4
      %v763 = vmax.f32 %v761, %v762
      %v764 = vrot.slane %v763, 2
      %v765 = vmax.f32 %v763, %v764
      %v766 = vrot.slane %v765, 1
      %v767 = vmax.f32 %v765, %v766
      %v768 = vsel %vm417, %v403, -inf
      %v769 = vrot.slane %v768, 4
      %v770 = vmax.f32 %v768, %v769
      %v771 = vrot.slane %v770, 2
      %v772 = vmax.f32 %v770, %v771
      %v773 = vrot.slane %v772, 1
      %v774 = vmax.f32 %v772, %v773
      %v775 = vsel %vm417, %v404, -inf
      %v776 = vrot.slane %v775, 4
      %v777 = vmax.f32 %v775, %v776
      %v778 = vrot.slane %v777, 2
      %v779 = vmax.f32 %v777, %v778
      %v780 = vrot.slane %v779, 1
      %v781 = vmax.f32 %v779, %v780
      %v782 = vsel %vm417, %v405, -inf
      %v783 = vrot.slane %v782, 4
      %v784 = vmax.f32 %v782, %v783
      %v785 = vrot.slane %v784, 2
      %v786 = vmax.f32 %v784, %v785
      %v787 = vrot.slane %v786, 1
      %v788 = vmax.f32 %v786, %v787
      %v789 = vsel %vm417, %v406, -inf
      %v790 = vrot.slane %v789, 4
      %v791 = vmax.f32 %v789, %v790
      %v792 = vrot.slane %v791, 2
      %v793 = vmax.f32 %v791, %v792
      %v794 = vrot.slane %v793, 1
      %v795 = vmax.f32 %v793, %v794
      %v796 = vsel %vm417, %v407, -inf
      %v797 = vrot.slane %v796, 4
      %v798 = vmax.f32 %v796, %v797
      %v799 = vrot.slane %v798, 2
      %v800 = vmax.f32 %v798, %v799
      %v801 = vrot.slane %v800, 1
      %v802 = vmax.f32 %v800, %v801
      %v803 = vsel %vm417, %v408, -inf
      %v804 = vrot.slane %v803, 4
      %v805 = vmax.f32 %v803, %v804
      %v806 = vrot.slane %v805, 2
      %v807 = vmax.f32 %v805, %v806
      %v808 = vrot.slane %v807, 1
      %v809 = vmax.f32 %v807, %v808
      %v810 = vsel %vm417, %v409, -inf
      %v811 = vrot.slane %v810, 4
      %v812 = vmax.f32 %v810, %v811
      %v813 = vrot.slane %v812, 2
      %v814 = vmax.f32 %v812, %v813
      %v815 = vrot.slane %v814, 1
      %v816 = vmax.f32 %v814, %v815
      %v817 = vsel %vm417, %v410, -inf
      %v818 = vrot.slane %v817, 4
      %v819 = vmax.f32 %v817, %v818
      %v820 = vrot.slane %v819, 2
      %v821 = vmax.f32 %v819, %v820
      %v822 = vrot.slane %v821, 1
      %v823 = vmax.f32 %v821, %v822
      %v824 = vsel %vm417, %v411, -inf
      %v825 = vrot.slane %v824, 4
      %v826 = vmax.f32 %v824, %v825
      %v827 = vrot.slane %v826, 2
      %v828 = vmax.f32 %v826, %v827
      %v829 = vrot.slane %v828, 1
      %v830 = vmax.f32 %v828, %v829
      %v831 = vsel %vm417, %v412, -inf
      %v832 = vrot.slane %v831, 4
      %v833 = vmax.f32 %v831, %v832
      %v834 = vrot.slane %v833, 2
      %v835 = vmax.f32 %v833, %v834
      %v836 = vrot.slane %v835, 1
      %v837 = vmax.f32 %v835, %v836
      %v838 = vsel %vm417, %v413, -inf
      %v839 = vrot.slane %v838, 4
      %v840 = vmax.f32 %v838, %v839
      %v841 = vrot.slane %v840, 2
      %v842 = vmax.f32 %v840, %v841
      %v843 = vrot.slane %v842, 1
      %v844 = vmax.f32 %v842, %v843
      %v845 = vsel %vm417, %v414, -inf
      %v846 = vrot.slane %v845, 4
      %v847 = vmax.f32 %v845, %v846
      %v848 = vrot.slane %v847, 2
      %v849 = vmax.f32 %v847, %v848
      %v850 = vrot.slane %v849, 1
      %v851 = vmax.f32 %v849, %v850
      %v852 = vsel %vm417, %v415, -inf
      %v853 = vrot.slane %v852, 4
      %v854 = vmax.f32 %v852, %v853
      %v855 = vrot.slane %v854, 2
      %v856 = vmax.f32 %v854, %v855
      %v857 = vrot.slane %v856, 1
      %v858 = vmax.f32 %v856, %v857
      %v859 = vsel %vm417, %v416, -inf
      %v860 = vrot.slane %v859, 4
      %v861 = vmax.f32 %v859, %v860
      %v862 = vrot.slane %v861, 2
      %v863 = vmax.f32 %v861, %v862
      %v864 = vrot.slane %v863, 1
      %v865 = vmax.f32 %v863, %v864
      %vm866 = vcmask 31744
      %867 = vst.msk [vmem:[#allocation2] sm:$0xff] %vm866, 0.0
      %868 = vst.msk [vmem:[#allocation2 + $0x8] sm:$0x3] %vm417, 0.0
      %869 = vst.msk [vmem:[#allocation2 + $0x10] sm:$0xff] %vm866, 0.0
      %870 = vst.msk [vmem:[#allocation2 + $0x18] sm:$0x3] %vm417, 0.0
      %871 = vst.msk [vmem:[#allocation2 + $0x20] sm:$0xff] %vm866, 0.0
      %872 = vst.msk [vmem:[#allocation2 + $0x28] sm:$0x3] %vm417, 0.0
      %873 = vst.msk [vmem:[#allocation2 + $0x30] sm:$0xff] %vm866, 0.0
      %874 = vst.msk [vmem:[#allocation2 + $0x38] sm:$0x3] %vm417, 0.0
      %875 = vst.msk [vmem:[#allocation2 + $0x40] sm:$0xff] %vm866, 0.0
      %876 = vst.msk [vmem:[#allocation2 + $0x48] sm:$0x3] %vm417, 0.0
      %877 = vst.msk [vmem:[#allocation2 + $0x50] sm:$0xff] %vm866, 0.0
      %878 = vst.msk [vmem:[#allocation2 + $0x58] sm:$0x3] %vm417, 0.0
      %879 = vst.msk [vmem:[#allocation2 + $0x60] sm:$0xff] %vm866, 0.0
      %880 = vst.msk [vmem:[#allocation2 + $0x68] sm:$0x3] %vm417, 0.0
      %881 = vst.msk [vmem:[#allocation2 + $0x70] sm:$0xff] %vm866, 0.0
      %882 = vst.msk [vmem:[#allocation2 + $0x78] sm:$0x3] %vm417, 0.0
      %883 = vst.msk [vmem:[#allocation2 + $0x80] sm:$0xff] %vm866, 0.0
      %884 = vst.msk [vmem:[#allocation2 + $0x88] sm:$0x3] %vm417, 0.0
      %885 = vst.msk [vmem:[#allocation2 + $0x90] sm:$0xff] %vm866, 0.0
      %886 = vst.msk [vmem:[#allocation2 + $0x98] sm:$0x3] %vm417, 0.0
      %vm951 = vcmask 1041409
      %v952 = vsel %vm951, %v431, %v424
      %vm953 = vcmask 1042434
      %v954 = vsel %vm953, %v438, %v952
      %vm955 = vcmask 1043459
      %v956 = vsel %vm955, %v445, %v954
      %vm957 = vcmask 1044484
      %v958 = vsel %vm957, %v452, %v956
      %vm959 = vcmask 1045509
      %v960 = vsel %vm959, %v459, %v958
      %vm961 = vcmask 1046534
      %v962 = vsel %vm961, %v466, %v960
      %vm963 = vcmask 1047559
      %v964 = vsel %vm963, %v473, %v962
      %v965 = vsel %vm951, %v487, %v480
      %v966 = vsel %vm953, %v494, %v965
      %v967 = vsel %vm955, %v501, %v966
      %v968 = vsel %vm957, %v508, %v967
      %v969 = vsel %vm959, %v515, %v968
      %v970 = vsel %vm961, %v522, %v969
      %v971 = vsel %vm963, %v529, %v970
      %v972 = vsel %vm951, %v543, %v536
      %v973 = vsel %vm953, %v550, %v972
      %v974 = vsel %vm955, %v557, %v973
      %v975 = vsel %vm957, %v564, %v974
      %v976 = vsel %vm959, %v571, %v975
      %v977 = vsel %vm961, %v578, %v976
      %v978 = vsel %vm963, %v585, %v977
      %v979 = vsel %vm951, %v599, %v592
      %v980 = vsel %vm953, %v606, %v979
      %v981 = vsel %vm955, %v613, %v980
      %v982 = vsel %vm957, %v620, %v981
      %v983 = vsel %vm959, %v627, %v982
      %v984 = vsel %vm961, %v634, %v983
      %v985 = vsel %vm963, %v641, %v984
      %v986 = vsel %vm951, %v655, %v648
      %v987 = vsel %vm953, %v662, %v986
      %v988 = vsel %vm955, %v669, %v987
      %v989 = vsel %vm957, %v676, %v988
      %v990 = vsel %vm959, %v683, %v989
      %v991 = vsel %vm961, %v690, %v990
      %v992 = vsel %vm963, %v697, %v991
      %v993 = vsel %vm951, %v711, %v704
      %v994 = vsel %vm953, %v718, %v993
      %v995 = vsel %vm955, %v725, %v994
      %v996 = vsel %vm957, %v732, %v995
      %v997 = vsel %vm959, %v739, %v996
      %v998 = vsel %vm961, %v746, %v997
      %v999 = vsel %vm963, %v753, %v998
      %v1000 = vsel %vm951, %v767, %v760
      %v1001 = vsel %vm953, %v774, %v1000
      %v1002 = vsel %vm955, %v781, %v1001
      %v1003 = vsel %vm957, %v788, %v1002
      %v1004 = vsel %vm959, %v795, %v1003
      %v1005 = vsel %vm961, %v802, %v1004
      %v1006 = vsel %vm963, %v809, %v1005
      %v1007 = vsel %vm951, %v823, %v816
      %v1008 = vsel %vm953, %v830, %v1007
      %v1009 = vsel %vm955, %v837, %v1008
      %v1010 = vsel %vm957, %v844, %v1009
      %v1011 = vsel %vm959, %v851, %v1010
      %v1012 = vsel %vm961, %v858, %v1011
      %v1013 = vsel %vm963, %v865, %v1012
      %s1022 = scalar_lea.vmem [#allocation2], 16
      %1023 = vst.msk [vmem:[%s1022 + $0x1] sm:$0xff] %vm866, %v964
      %1024 = vst.msk [vmem:[%s1022 + $0x11] sm:$0xff] %vm866, %v971
      %1025 = vst.msk [vmem:[%s1022 + $0x21] sm:$0xff] %vm866, %v978
      %1026 = vst.msk [vmem:[%s1022 + $0x31] sm:$0xff] %vm866, %v985
      %1027 = vst.msk [vmem:[%s1022 + $0x41] sm:$0xff] %vm866, %v992
      %1028 = vst.msk [vmem:[%s1022 + $0x51] sm:$0xff] %vm866, %v999
      %1029 = vst.msk [vmem:[%s1022 + $0x61] sm:$0xff] %vm866, %v1006
      %1030 = vst.msk [vmem:[%s1022 + $0x71] sm:$0xff] %vm866, %v1013
      %v1031 = vld [vmem:[#allocation2] sm:$0xff]
      %v1032 = vld [vmem:[#allocation2 + $0x8] sm:$0x3]
      %v1033 = vld [vmem:[#allocation2 + $0x10] sm:$0xff]
      %v1034 = vld [vmem:[#allocation2 + $0x18] sm:$0x3]
      %v1035 = vld [vmem:[#allocation2 + $0x20] sm:$0xff]
      %v1036 = vld [vmem:[#allocation2 + $0x28] sm:$0x3]
      %v1037 = vld [vmem:[#allocation2 + $0x30] sm:$0xff]
      %v1038 = vld [vmem:[#allocation2 + $0x38] sm:$0x3]
      %v1039 = vld [vmem:[#allocation2 + $0x40] sm:$0xff]
      %v1040 = vld [vmem:[#allocation2 + $0x48] sm:$0x3]
      %v1041 = vld [vmem:[#allocation2 + $0x50] sm:$0xff]
      %v1042 = vld [vmem:[#allocation2 + $0x58] sm:$0x3]
      %v1043 = vld [vmem:[#allocation2 + $0x60] sm:$0xff]
      %v1044 = vld [vmem:[#allocation2 + $0x68] sm:$0x3]
      %v1045 = vld [vmem:[#allocation2 + $0x70] sm:$0xff]
      %v1046 = vld [vmem:[#allocation2 + $0x78] sm:$0x3]
      %v1047 = vld [vmem:[#allocation2 + $0x80] sm:$0xff]
      %v1048 = vld [vmem:[#allocation2 + $0x88] sm:$0x3]
      %v1049 = vld [vmem:[#allocation2 + $0x90] sm:$0xff]
      %v1050 = vld [vmem:[#allocation2 + $0x98] sm:$0x3]
      %vm1067 = vcmask 1046528
      %v1068 = vrot.slane %v1031, 1
      %v1069 = vrot.slane %v1032, 1
      %v1070 = vsel %vm1067, %v1068, %v1069
      %v1071 = vrot.slane %v1033, 1
      %v1072 = vrot.slane %v1034, 1
      %v1073 = vsel %vm1067, %v1071, %v1072
      %v1074 = vrot.slane %v1035, 1
      %v1075 = vrot.slane %v1036, 1
      %v1076 = vsel %vm1067, %v1074, %v1075
      %v1077 = vrot.slane %v1037, 1
      %v1078 = vrot.slane %v1038, 1
      %v1079 = vsel %vm1067, %v1077, %v1078
      %v1080 = vrot.slane %v1039, 1
      %v1081 = vrot.slane %v1040, 1
      %v1082 = vsel %vm1067, %v1080, %v1081
      %v1083 = vrot.slane %v1041, 1
      %v1084 = vrot.slane %v1042, 1
      %v1085 = vsel %vm1067, %v1083, %v1084
      %v1086 = vrot.slane %v1043, 1
      %v1087 = vrot.slane %v1044, 1
      %v1088 = vsel %vm1067, %v1086, %v1087
      %v1089 = vrot.slane %v1045, 1
      %v1090 = vrot.slane %v1046, 1
      %v1091 = vsel %vm1067, %v1089, %v1090
      %1092 = vrot.lane.b32.xlu0 %v1070, 4
      %v1093 = vpop.permute.xlu0 %1092
      %1094 = vrot.lane.b32.xlu0 %v1073, 4
      %v1095 = vpop.permute.xlu0 %1094
      %1096 = vrot.lane.b32.xlu0 %v1076, 4
      %v1097 = vpop.permute.xlu0 %1096
      %1098 = vrot.lane.b32.xlu0 %v1079, 4
      %v1099 = vpop.permute.xlu0 %1098
      %1100 = vrot.lane.b32.xlu0 %v1082, 4
      %v1101 = vpop.permute.xlu0 %1100
      %1102 = vrot.lane.b32.xlu0 %v1085, 4
      %v1103 = vpop.permute.xlu0 %1102
      %1104 = vrot.lane.b32.xlu0 %v1088, 4
      %v1105 = vpop.permute.xlu0 %1104
      %1106 = vrot.lane.b32.xlu0 %v1091, 4
      %v1107 = vpop.permute.xlu0 %1106
      %vm1116 = vcmask 1045504
      %v1117 = vrot.slane %v1031, 2
      %v1118 = vrot.slane %v1032, 2
      %v1119 = vsel %vm1116, %v1117, %v1118
      %v1120 = vrot.slane %v1033, 2
      %v1121 = vrot.slane %v1034, 2
      %v1122 = vsel %vm1116, %v1120, %v1121
      %v1123 = vrot.slane %v1035, 2
      %v1124 = vrot.slane %v1036, 2
      %v1125 = vsel %vm1116, %v1123, %v1124
      %v1126 = vrot.slane %v1037, 2
      %v1127 = vrot.slane %v1038, 2
      %v1128 = vsel %vm1116, %v1126, %v1127
      %v1129 = vrot.slane %v1039, 2
      %v1130 = vrot.slane %v1040, 2
      %v1131 = vsel %vm1116, %v1129, %v1130
      %v1132 = vrot.slane %v1041, 2
      %v1133 = vrot.slane %v1042, 2
      %v1134 = vsel %vm1116, %v1132, %v1133
      %v1135 = vrot.slane %v1043, 2
      %v1136 = vrot.slane %v1044, 2
      %v1137 = vsel %vm1116, %v1135, %v1136
      %v1138 = vrot.slane %v1045, 2
      %v1139 = vrot.slane %v1046, 2
      %v1140 = vsel %vm1116, %v1138, %v1139
      %1141 = vrot.lane.b32.xlu0 %v1119, 8
      %v1142 = vpop.permute.xlu0 %1141
      %1143 = vrot.lane.b32.xlu0 %v1122, 8
      %v1144 = vpop.permute.xlu0 %1143
      %1145 = vrot.lane.b32.xlu0 %v1125, 8
      %v1146 = vpop.permute.xlu0 %1145
      %1147 = vrot.lane.b32.xlu0 %v1128, 8
      %v1148 = vpop.permute.xlu0 %1147
      %1149 = vrot.lane.b32.xlu0 %v1131, 8
      %v1150 = vpop.permute.xlu0 %1149
      %1151 = vrot.lane.b32.xlu0 %v1134, 8
      %v1152 = vpop.permute.xlu0 %1151
      %1153 = vrot.lane.b32.xlu0 %v1137, 8
      %v1154 = vpop.permute.xlu0 %1153
      %1155 = vrot.lane.b32.xlu0 %v1140, 8
      %v1156 = vpop.permute.xlu0 %1155
      %1166 = vrot.lane.b32.xlu0 %v1033, 12
      %v1167 = vpop.permute.xlu0 %1166
      %1168 = vrot.lane.b32.xlu0 %v1035, 12
      %v1169 = vpop.permute.xlu0 %1168
      %1170 = vrot.lane.b32.xlu0 %v1037, 12
      %v1171 = vpop.permute.xlu0 %1170
      %1172 = vrot.lane.b32.xlu0 %v1039, 12
      %v1173 = vpop.permute.xlu0 %1172
      %1174 = vrot.lane.b32.xlu0 %v1041, 12
      %v1175 = vpop.permute.xlu0 %1174
      %1176 = vrot.lane.b32.xlu0 %v1043, 12
      %v1177 = vpop.permute.xlu0 %1176
      %1178 = vrot.lane.b32.xlu0 %v1045, 12
      %v1179 = vpop.permute.xlu0 %1178
      %1180 = vrot.lane.b32.xlu0 %v1047, 12
      %v1181 = vpop.permute.xlu0 %1180
      %v1191 = vrot.slane %v1047, 1
      %v1192 = vrot.slane %v1048, 1
      %v1193 = vsel %vm1067, %v1191, %v1192
      %1194 = vrot.lane.b32.xlu0 %v1073, 16
      %v1195 = vpop.permute.xlu0 %1194
      %1196 = vrot.lane.b32.xlu0 %v1076, 16
      %v1197 = vpop.permute.xlu0 %1196
      %1198 = vrot.lane.b32.xlu0 %v1079, 16
      %v1199 = vpop.permute.xlu0 %1198
      %1200 = vrot.lane.b32.xlu0 %v1082, 16
      %v1201 = vpop.permute.xlu0 %1200
      %1202 = vrot.lane.b32.xlu0 %v1085, 16
      %v1203 = vpop.permute.xlu0 %1202
      %1204 = vrot.lane.b32.xlu0 %v1088, 16
      %v1205 = vpop.permute.xlu0 %1204
      %1206 = vrot.lane.b32.xlu0 %v1091, 16
      %v1207 = vpop.permute.xlu0 %1206
      %1208 = vrot.lane.b32.xlu0 %v1193, 16
      %v1209 = vpop.permute.xlu0 %1208
      %v1218 = vrot.slane %v1047, 2
      %v1219 = vrot.slane %v1048, 2
      %v1220 = vsel %vm1116, %v1218, %v1219
      %1221 = vrot.lane.b32.xlu0 %v1122, 20
      %v1222 = vpop.permute.xlu0 %1221
      %1223 = vrot.lane.b32.xlu0 %v1125, 20
      %v1224 = vpop.permute.xlu0 %1223
      %1225 = vrot.lane.b32.xlu0 %v1128, 20
      %v1226 = vpop.permute.xlu0 %1225
      %1227 = vrot.lane.b32.xlu0 %v1131, 20
      %v1228 = vpop.permute.xlu0 %1227
      %1229 = vrot.lane.b32.xlu0 %v1134, 20
      %v1230 = vpop.permute.xlu0 %1229
      %1231 = vrot.lane.b32.xlu0 %v1137, 20
      %v1232 = vpop.permute.xlu0 %1231
      %1233 = vrot.lane.b32.xlu0 %v1140, 20
      %v1234 = vpop.permute.xlu0 %1233
      %1235 = vrot.lane.b32.xlu0 %v1220, 20
      %v1236 = vpop.permute.xlu0 %1235
      %1246 = vrot.lane.b32.xlu0 %v1035, 24
      %v1247 = vpop.permute.xlu0 %1246
      %1248 = vrot.lane.b32.xlu0 %v1037, 24
      %v1249 = vpop.permute.xlu0 %1248
      %1250 = vrot.lane.b32.xlu0 %v1039, 24
      %v1251 = vpop.permute.xlu0 %1250
      %1252 = vrot.lane.b32.xlu0 %v1041, 24
      %v1253 = vpop.permute.xlu0 %1252
      %1254 = vrot.lane.b32.xlu0 %v1043, 24
      %v1255 = vpop.permute.xlu0 %1254
      %1256 = vrot.lane.b32.xlu0 %v1045, 24
      %v1257 = vpop.permute.xlu0 %1256
      %1258 = vrot.lane.b32.xlu0 %v1047, 24
      %v1259 = vpop.permute.xlu0 %1258
      %1260 = vrot.lane.b32.xlu0 %v1049, 24
      %v1261 = vpop.permute.xlu0 %1260
      %v1271 = vrot.slane %v1049, 1
      %v1272 = vrot.slane %v1050, 1
      %v1273 = vsel %vm1067, %v1271, %v1272
      %1274 = vrot.lane.b32.xlu0 %v1076, 28
      %v1275 = vpop.permute.xlu0 %1274
      %1276 = vrot.lane.b32.xlu0 %v1079, 28
      %v1277 = vpop.permute.xlu0 %1276
      %1278 = vrot.lane.b32.xlu0 %v1082, 28
      %v1279 = vpop.permute.xlu0 %1278
      %1280 = vrot.lane.b32.xlu0 %v1085, 28
      %v1281 = vpop.permute.xlu0 %1280
      %1282 = vrot.lane.b32.xlu0 %v1088, 28
      %v1283 = vpop.permute.xlu0 %1282
      %1284 = vrot.lane.b32.xlu0 %v1091, 28
      %v1285 = vpop.permute.xlu0 %1284
      %1286 = vrot.lane.b32.xlu0 %v1193, 28
      %v1287 = vpop.permute.xlu0 %1286
      %1288 = vrot.lane.b32.xlu0 %v1273, 28
      %v1289 = vpop.permute.xlu0 %1288
      %v1298 = vrot.slane %v1049, 2
      %v1299 = vrot.slane %v1050, 2
      %v1300 = vsel %vm1116, %v1298, %v1299
      %1301 = vrot.lane.b32.xlu0 %v1125, 32
      %v1302 = vpop.permute.xlu0 %1301
      %1303 = vrot.lane.b32.xlu0 %v1128, 32
      %v1304 = vpop.permute.xlu0 %1303
      %1305 = vrot.lane.b32.xlu0 %v1131, 32
      %v1306 = vpop.permute.xlu0 %1305
      %1307 = vrot.lane.b32.xlu0 %v1134, 32
      %v1308 = vpop.permute.xlu0 %1307
      %1309 = vrot.lane.b32.xlu0 %v1137, 32
      %v1310 = vpop.permute.xlu0 %1309
      %1311 = vrot.lane.b32.xlu0 %v1140, 32
      %v1312 = vpop.permute.xlu0 %1311
      %1313 = vrot.lane.b32.xlu0 %v1220, 32
      %v1314 = vpop.permute.xlu0 %1313
      %1315 = vrot.lane.b32.xlu0 %v1300, 32
      %v1316 = vpop.permute.xlu0 %1315
      %v1325 = vsel %vm866, %v1031, %v1093
      %v1326 = vsel %vm866, %v1033, %v1095
      %v1327 = vsel %vm866, %v1035, %v1097
      %v1328 = vsel %vm866, %v1037, %v1099
      %v1329 = vsel %vm866, %v1039, %v1101
      %v1330 = vsel %vm866, %v1041, %v1103
      %v1331 = vsel %vm866, %v1043, %v1105
      %v1332 = vsel %vm866, %v1045, %v1107
      %vm1333 = vcmask 64512
      %v1334 = vsel %vm1333, %v1325, %v1142
      %v1335 = vsel %vm1333, %v1326, %v1144
      %v1336 = vsel %vm1333, %v1327, %v1146
      %v1337 = vsel %vm1333, %v1328, %v1148
      %v1338 = vsel %vm1333, %v1329, %v1150
      %v1339 = vsel %vm1333, %v1330, %v1152
      %v1340 = vsel %vm1333, %v1331, %v1154
      %v1341 = vsel %vm1333, %v1332, %v1156
      %vm1342 = vcmask 97280
      %v1343 = vsel %vm1342, %v1334, %v1167
      %v1344 = vsel %vm1342, %v1335, %v1169
      %v1345 = vsel %vm1342, %v1336, %v1171
      %v1346 = vsel %vm1342, %v1337, %v1173
      %v1347 = vsel %vm1342, %v1338, %v1175
      %v1348 = vsel %vm1342, %v1339, %v1177
      %v1349 = vsel %vm1342, %v1340, %v1179
      %v1350 = vsel %vm1342, %v1341, %v1181
      %vm1351 = vcmask 130048
      %v1352 = vsel %vm1351, %v1343, %v1195
      %v1353 = vsel %vm1351, %v1344, %v1197
      %v1354 = vsel %vm1351, %v1345, %v1199
      %v1355 = vsel %vm1351, %v1346, %v1201
      %v1356 = vsel %vm1351, %v1347, %v1203
      %v1357 = vsel %vm1351, %v1348, %v1205
      %v1358 = vsel %vm1351, %v1349, %v1207
      %v1359 = vsel %vm1351, %v1350, %v1209
      %vm1360 = vcmask 162816
      %v1361 = vsel %vm1360, %v1352, %v1222
      %v1362 = vsel %vm1360, %v1353, %v1224
      %v1363 = vsel %vm1360, %v1354, %v1226
      %v1364 = vsel %vm1360, %v1355, %v1228
      %v1365 = vsel %vm1360, %v1356, %v1230
      %v1366 = vsel %vm1360, %v1357, %v1232
      %v1367 = vsel %vm1360, %v1358, %v1234
      %v1368 = vsel %vm1360, %v1359, %v1236
      %vm1369 = vcmask 195584
      %v1370 = vsel %vm1369, %v1361, %v1247
      %v1371 = vsel %vm1369, %v1362, %v1249
      %v1372 = vsel %vm1369, %v1363, %v1251
      %v1373 = vsel %vm1369, %v1364, %v1253
      %v1374 = vsel %vm1369, %v1365, %v1255
      %v1375 = vsel %vm1369, %v1366, %v1257
      %v1376 = vsel %vm1369, %v1367, %v1259
      %v1377 = vsel %vm1369, %v1368, %v1261
      %vm1378 = vcmask 228352
      %v1379 = vsel %vm1378, %v1370, %v1275
      %v1380 = vsel %vm1378, %v1371, %v1277
      %v1381 = vsel %vm1378, %v1372, %v1279
      %v1382 = vsel %vm1378, %v1373, %v1281
      %v1383 = vsel %vm1378, %v1374, %v1283
      %v1384 = vsel %vm1378, %v1375, %v1285
      %v1385 = vsel %vm1378, %v1376, %v1287
      %v1386 = vsel %vm1378, %v1377, %v1289
      %vm1387 = vcmask 261120
      %v1388 = vsel %vm1387, %v1379, %v1302
      %v1389 = vsel %vm1387, %v1380, %v1304
      %v1390 = vsel %vm1387, %v1381, %v1306
      %v1391 = vsel %vm1387, %v1382, %v1308
      %v1392 = vsel %vm1387, %v1383, %v1310
      %v1393 = vsel %vm1387, %v1384, %v1312
      %v1394 = vsel %vm1387, %v1385, %v1314
      %v1395 = vsel %vm1387, %v1386, %v1316
      %v1396 = vld [vmem:[%s1] sm:$0xff]
      %v1397 = vld [vmem:[%s1 + $0x8] sm:$0xff]
      %v1398 = vld [vmem:[%s1 + $0x10] sm:$0xff]
      %v1399 = vld [vmem:[%s1 + $0x18] sm:$0xff]
      %v1400 = vld [vmem:[%s1 + $0x20] sm:$0xf]
      %vm1401 = vcmask 293888
      %v1403 = vsel %vm1401, %v1388, 0
      %v1406 = vsel %vm1401, %v1389, 0
      %v1409 = vsel %vm1401, %v1390, 0
      %v1412 = vsel %vm1401, %v1391, 0
      %v1415 = vsel %vm1401, %v1392, 0
      %v1418 = vsel %vm1401, %v1393, 0
      %v1421 = vsel %vm1401, %v1394, 0
      %v1424 = vsel %vm1401, %v1395, 0
      %vm1426 = vcmask 1043456
      %v1428 = vsel %vm1426, %v1400, 0
      %1430 = vmatprep.subr.mxu0 0.0
      %1431 = vmatpush1.msra.mxu0 0.0
      %1432 = vmatprep.subr.mxu0 0.0
      %1433 = vmatpush1.msra.mxu0 0.0
      %1434 = vmatprep.subr.mxu0 0.0
      %1435 = vmatpush1.msra.mxu0 0.0
      %1436 = vmatprep.subr.mxu0 0.0
      %1437 = vmatpush1.msra.mxu0 0.0
      %1438 = vmatprep.subr.mxu0 0.0
      %1439 = vmatpush1.msra.mxu0 0.0
      %1440 = vmatprep.subr.mxu0 0.0
      %1441 = vmatpush1.msra.mxu0 0.0
      %1442 = vmatprep.subr.mxu0 0.0
      %1443 = vmatpush1.msra.mxu0 0.0
      %1444 = vmatprep.subr.mxu0 0.0
      %1445 = vmatpush1.msra.mxu0 0.0
      %1446 = vmatprep.subr.mxu0 0.0
      %1447 = vmatpush1.msra.mxu0 0.0
      %1448 = vmatprep.subr.mxu0 0.0
      %1449 = vmatpush1.msra.mxu0 0.0
      %1450 = vmatprep.subr.mxu0 0.0
      %1451 = vmatpush1.msra.mxu0 0.0
      %1452 = vmatprep.subr.mxu0 0.0
      %1453 = vmatpush1.msra.mxu0 %v1428
      %1454 = vmatprep.subr.mxu0 0.0
      %1455 = vmatpush1.msra.mxu0 %v1399
      %1456 = vmatprep.subr.mxu0 0.0
      %1457 = vmatpush1.msra.mxu0 %v1398
      %1458 = vmatprep.subr.mxu0 0.0
      %1459 = vmatpush1.msra.mxu0 %v1397
      %1460 = vmatprep.subr.mxu0 0.0
      %1461 = vmatpush1.msra.mxu0 %v1396
      %1462 = vmatprep.subr.mxu0 0.0
      %1463 = vmatpush2.msra.mxu0 0.0
      %1464 = vmatprep.subr.mxu0 0.0
      %1465 = vmatpush2.msra.mxu0 0.0
      %1466 = vmatprep.subr.mxu0 0.0
      %1467 = vmatpush2.msra.mxu0 0.0
      %1468 = vmatprep.subr.mxu0 0.0
      %1469 = vmatpush2.msra.mxu0 0.0
      %1470 = vmatprep.subr.mxu0 0.0
      %1471 = vmatpush2.msra.mxu0 0.0
      %1472 = vmatprep.subr.mxu0 0.0
      %1473 = vmatpush2.msra.mxu0 0.0
      %1474 = vmatprep.subr.mxu0 0.0
      %1475 = vmatpush2.msra.mxu0 0.0
      %1476 = vmatprep.subr.mxu0 0.0
      %1477 = vmatpush2.msra.mxu0 0.0
      %1478 = vmatprep.subr.mxu0 0.0
      %1479 = vmatpush2.msra.mxu0 0.0
      %1480 = vmatprep.subr.mxu0 0.0
      %1481 = vmatpush2.msra.mxu0 0.0
      %1482 = vmatprep.subr.mxu0 0.0
      %1483 = vmatpush2.msra.mxu0 0.0
      %1484 = vmatprep.subr.mxu0 0.0
      %1485 = vmatpush2.msra.mxu0 0.0
      %1486 = vmatprep.subr.mxu0 0.0
      %1487 = vmatpush2.msra.mxu0 0.0
      %1488 = vmatprep.subr.mxu0 0.0
      %1489 = vmatpush2.msra.mxu0 0.0
      %1490 = vmatprep.subr.mxu0 0.0
      %1491 = vmatpush2.msra.mxu0 0.0
      %1492 = vmatprep.subr.mxu0 0.0
      %1493 = vmatpush2.msra.mxu0 0.0
      %1494 = vmatprep.mubr.f32.mxu0 0.0
      %1495 = vmatmul.mubr.f32.gmra.mxu0 %v1403
      %v1496 = vpop.f32.mrf.mxu0
      %v1497 = vadd.f32 0.0, %v1496
      %v1498 = vpop.f32.mrf.mxu0
      %1499 = vmatprep.mubr.f32.mxu0 0.0
      %1500 = vmatmul.mubr.f32.gmra.mxu0 %v1406
      %v1501 = vpop.f32.mrf.mxu0
      %v1502 = vadd.f32 0.0, %v1501
      %v1503 = vpop.f32.mrf.mxu0
      %1504 = vmatprep.mubr.f32.mxu0 0.0
      %1505 = vmatmul.mubr.f32.gmra.mxu0 %v1409
      %v1506 = vpop.f32.mrf.mxu0
      %v1507 = vadd.f32 0.0, %v1506
      %v1508 = vpop.f32.mrf.mxu0
      %1509 = vmatprep.mubr.f32.mxu0 0.0
      %1510 = vmatmul.mubr.f32.gmra.mxu0 %v1412
      %v1511 = vpop.f32.mrf.mxu0
      %v1512 = vadd.f32 0.0, %v1511
      %v1513 = vpop.f32.mrf.mxu0
      %1514 = vmatprep.mubr.f32.mxu0 0.0
      %1515 = vmatmul.mubr.f32.gmra.mxu0 %v1415
      %v1516 = vpop.f32.mrf.mxu0
      %v1517 = vadd.f32 0.0, %v1516
      %v1518 = vpop.f32.mrf.mxu0
      %1519 = vmatprep.mubr.f32.mxu0 0.0
      %1520 = vmatmul.mubr.f32.gmra.mxu0 %v1418
      %v1521 = vpop.f32.mrf.mxu0
      %v1522 = vadd.f32 0.0, %v1521
      %v1523 = vpop.f32.mrf.mxu0
      %1524 = vmatprep.mubr.f32.mxu0 0.0
      %1525 = vmatmul.mubr.f32.gmra.mxu0 %v1421
      %v1526 = vpop.f32.mrf.mxu0
      %v1527 = vadd.f32 0.0, %v1526
      %v1528 = vpop.f32.mrf.mxu0
      %1529 = vmatprep.mubr.f32.mxu0 0.0
      %1530 = vmatmul.mubr.f32.gmra.mxu0 %v1424
      %v1531 = vpop.f32.mrf.mxu0
      %v1532 = vadd.f32 0.0, %v1531
      %v1533 = vpop.f32.mrf.mxu0
      %1534 = vdwg.mxu0
      %v1535 = vld [vmem:[%s2] sm:$0x1]
      %v1536 = vlaneseq
      %v1537 = vshrl.u32 %v1536, 7
      %v1538 = vsub.s32 0, %v1537
      %v1539 = vrot.slane %v1535, %v1538
      %v1540 = vmul.f32 %v1497, %v1539
      %v1541 = vmul.f32 %v1502, %v1539
      %v1542 = vmul.f32 %v1507, %v1539
      %v1543 = vmul.f32 %v1512, %v1539
      %v1544 = vmul.f32 %v1517, %v1539
      %v1545 = vmul.f32 %v1522, %v1539
      %v1546 = vmul.f32 %v1527, %v1539
      %v1547 = vmul.f32 %v1532, %v1539
      %v1548 = vld [vmem:[%s2 + $0x1] sm:$0x1]
      %v1549 = vlaneseq
      %v1550 = vshrl.u32 %v1549, 7
      %v1551 = vsub.s32 0, %v1550
      %v1552 = vrot.slane %v1548, %v1551
      %v1553 = vadd.f32 %v1540, %v1552
      %v1554 = vadd.f32 %v1541, %v1552
      %v1555 = vadd.f32 %v1542, %v1552
      %v1556 = vadd.f32 %v1543, %v1552
      %v1557 = vadd.f32 %v1544, %v1552
      %v1558 = vadd.f32 %v1545, %v1552
      %v1559 = vadd.f32 %v1546, %v1552
      %v1560 = vadd.f32 %v1547, %v1552
      %v1561 = vmax.f32 %v1553, 0.0
      %v1562 = vmax.f32 %v1554, 0.0
      %v1563 = vmax.f32 %v1555, 0.0
      %v1564 = vmax.f32 %v1556, 0.0
      %v1565 = vmax.f32 %v1557, 0.0
      %v1566 = vmax.f32 %v1558, 0.0
      %v1567 = vmax.f32 %v1559, 0.0
      %v1568 = vmax.f32 %v1560, 0.0
      %1569 = vst.msk [vmem:[#allocation3] sm:$0xff] %vm1333, 0.0
      %vm1570 = vcmask 58368
      %1571 = vst.msk [vmem:[#allocation3 + $0x8] sm:$0x3] %vm1570, 0.0
      %1572 = vst.msk [vmem:[#allocation3 + $0x10] sm:$0xff] %vm1333, 0.0
      %1573 = vst.msk [vmem:[#allocation3 + $0x18] sm:$0x3] %vm1570, 0.0
      %1574 = vst.msk [vmem:[#allocation3 + $0x20] sm:$0xff] %vm1333, 0.0
      %1575 = vst.msk [vmem:[#allocation3 + $0x28] sm:$0x3] %vm1570, 0.0
      %1576 = vst.msk [vmem:[#allocation3 + $0x30] sm:$0xff] %vm1333, 0.0
      %1577 = vst.msk [vmem:[#allocation3 + $0x38] sm:$0x3] %vm1570, 0.0
      %1578 = vst.msk [vmem:[#allocation3 + $0x40] sm:$0xff] %vm1333, 0.0
      %1579 = vst.msk [vmem:[#allocation3 + $0x48] sm:$0x3] %vm1570, 0.0
      %1580 = vst.msk [vmem:[#allocation3 + $0x50] sm:$0xff] %vm1333, 0.0
      %1581 = vst.msk [vmem:[#allocation3 + $0x58] sm:$0x3] %vm1570, 0.0
      %1582 = vst.msk [vmem:[#allocation3 + $0x60] sm:$0xff] %vm1333, 0.0
      %1583 = vst.msk [vmem:[#allocation3 + $0x68] sm:$0x3] %vm1570, 0.0
      %1584 = vst.msk [vmem:[#allocation3 + $0x70] sm:$0xff] %vm1333, 0.0
      %1585 = vst.msk [vmem:[#allocation3 + $0x78] sm:$0x3] %vm1570, 0.0
      %1586 = vst.msk [vmem:[#allocation3 + $0x80] sm:$0xff] %vm1333, 0.0
      %1587 = vst.msk [vmem:[#allocation3 + $0x88] sm:$0x3] %vm1570, 0.0
      %1588 = vst.msk [vmem:[#allocation3 + $0x90] sm:$0xff] %vm1333, 0.0
      %1589 = vst.msk [vmem:[#allocation3 + $0x98] sm:$0x3] %vm1570, 0.0
      %s1590 = scalar_lea.vmem [#allocation3], 16
      %1591 = vst.msk [vmem:[%s1590 + $0x1] sm:$0xff] %vm1333, %v1561
      %1592 = vst.msk [vmem:[%s1590 + $0x11] sm:$0xff] %vm1333, %v1562
      %1593 = vst.msk [vmem:[%s1590 + $0x21] sm:$0xff] %vm1333, %v1563
      %1594 = vst.msk [vmem:[%s1590 + $0x31] sm:$0xff] %vm1333, %v1564
      %1595 = vst.msk [vmem:[%s1590 + $0x41] sm:$0xff] %vm1333, %v1565
      %1596 = vst.msk [vmem:[%s1590 + $0x51] sm:$0xff] %vm1333, %v1566
      %1597 = vst.msk [vmem:[%s1590 + $0x61] sm:$0xff] %vm1333, %v1567
      %1598 = vst.msk [vmem:[%s1590 + $0x71] sm:$0xff] %vm1333, %v1568
      %v1599 = vld [vmem:[#allocation3] sm:$0xff]
      %v1600 = vld [vmem:[#allocation3 + $0x8] sm:$0x3]
      %v1601 = vld [vmem:[#allocation3 + $0x10] sm:$0xff]
      %v1602 = vld [vmem:[#allocation3 + $0x18] sm:$0x3]
      %v1603 = vld [vmem:[#allocation3 + $0x20] sm:$0xff]
      %v1604 = vld [vmem:[#allocation3 + $0x28] sm:$0x3]
      %v1605 = vld [vmem:[#allocation3 + $0x30] sm:$0xff]
      %v1606 = vld [vmem:[#allocation3 + $0x38] sm:$0x3]
      %v1607 = vld [vmem:[#allocation3 + $0x40] sm:$0xff]
      %v1608 = vld [vmem:[#allocation3 + $0x48] sm:$0x3]
      %v1609 = vld [vmem:[#allocation3 + $0x50] sm:$0xff]
      %v1610 = vld [vmem:[#allocation3 + $0x58] sm:$0x3]
      %v1611 = vld [vmem:[#allocation3 + $0x60] sm:$0xff]
      %v1612 = vld [vmem:[#allocation3 + $0x68] sm:$0x3]
      %v1613 = vld [vmem:[#allocation3 + $0x70] sm:$0xff]
      %v1614 = vld [vmem:[#allocation3 + $0x78] sm:$0x3]
      %v1615 = vld [vmem:[#allocation3 + $0x80] sm:$0xff]
      %v1616 = vld [vmem:[#allocation3 + $0x88] sm:$0x3]
      %v1617 = vld [vmem:[#allocation3 + $0x90] sm:$0xff]
      %v1618 = vld [vmem:[#allocation3 + $0x98] sm:$0x3]
      %v1635 = vrot.slane %v1599, 1
      %v1636 = vrot.slane %v1600, 1
      %v1637 = vsel %vm1067, %v1635, %v1636
      %v1638 = vrot.slane %v1601, 1
      %v1639 = vrot.slane %v1602, 1
      %v1640 = vsel %vm1067, %v1638, %v1639
      %v1641 = vrot.slane %v1603, 1
      %v1642 = vrot.slane %v1604, 1
      %v1643 = vsel %vm1067, %v1641, %v1642
      %v1644 = vrot.slane %v1605, 1
      %v1645 = vrot.slane %v1606, 1
      %v1646 = vsel %vm1067, %v1644, %v1645
      %v1647 = vrot.slane %v1607, 1
      %v1648 = vrot.slane %v1608, 1
      %v1649 = vsel %vm1067, %v1647, %v1648
      %v1650 = vrot.slane %v1609, 1
      %v1651 = vrot.slane %v1610, 1
      %v1652 = vsel %vm1067, %v1650, %v1651
      %v1653 = vrot.slane %v1611, 1
      %v1654 = vrot.slane %v1612, 1
      %v1655 = vsel %vm1067, %v1653, %v1654
      %v1656 = vrot.slane %v1613, 1
      %v1657 = vrot.slane %v1614, 1
      %v1658 = vsel %vm1067, %v1656, %v1657
      %1659 = vrot.lane.b32.xlu0 %v1637, 8
      %v1660 = vpop.permute.xlu0 %1659
      %1661 = vrot.lane.b32.xlu0 %v1640, 8
      %v1662 = vpop.permute.xlu0 %1661
      %1663 = vrot.lane.b32.xlu0 %v1643, 8
      %v1664 = vpop.permute.xlu0 %1663
      %1665 = vrot.lane.b32.xlu0 %v1646, 8
      %v1666 = vpop.permute.xlu0 %1665
      %1667 = vrot.lane.b32.xlu0 %v1649, 8
      %v1668 = vpop.permute.xlu0 %1667
      %1669 = vrot.lane.b32.xlu0 %v1652, 8
      %v1670 = vpop.permute.xlu0 %1669
      %1671 = vrot.lane.b32.xlu0 %v1655, 8
      %v1672 = vpop.permute.xlu0 %1671
      %1673 = vrot.lane.b32.xlu0 %v1658, 8
      %v1674 = vpop.permute.xlu0 %1673
      %v1683 = vrot.slane %v1599, 2
      %v1684 = vrot.slane %v1600, 2
      %v1685 = vsel %vm1116, %v1683, %v1684
      %v1686 = vrot.slane %v1601, 2
      %v1687 = vrot.slane %v1602, 2
      %v1688 = vsel %vm1116, %v1686, %v1687
      %v1689 = vrot.slane %v1603, 2
      %v1690 = vrot.slane %v1604, 2
      %v1691 = vsel %vm1116, %v1689, %v1690
      %v1692 = vrot.slane %v1605, 2
      %v1693 = vrot.slane %v1606, 2
      %v1694 = vsel %vm1116, %v1692, %v1693
      %v1695 = vrot.slane %v1607, 2
      %v1696 = vrot.slane %v1608, 2
      %v1697 = vsel %vm1116, %v1695, %v1696
      %v1698 = vrot.slane %v1609, 2
      %v1699 = vrot.slane %v1610, 2
      %v1700 = vsel %vm1116, %v1698, %v1699
      %v1701 = vrot.slane %v1611, 2
      %v1702 = vrot.slane %v1612, 2
      %v1703 = vsel %vm1116, %v1701, %v1702
      %v1704 = vrot.slane %v1613, 2
      %v1705 = vrot.slane %v1614, 2
      %v1706 = vsel %vm1116, %v1704, %v1705
      %1707 = vrot.lane.b32.xlu0 %v1685, 16
      %v1708 = vpop.permute.xlu0 %1707
      %1709 = vrot.lane.b32.xlu0 %v1688, 16
      %v1710 = vpop.permute.xlu0 %1709
      %1711 = vrot.lane.b32.xlu0 %v1691, 16
      %v1712 = vpop.permute.xlu0 %1711
      %1713 = vrot.lane.b32.xlu0 %v1694, 16
      %v1714 = vpop.permute.xlu0 %1713
      %1715 = vrot.lane.b32.xlu0 %v1697, 16
      %v1716 = vpop.permute.xlu0 %1715
      %1717 = vrot.lane.b32.xlu0 %v1700, 16
      %v1718 = vpop.permute.xlu0 %1717
      %1719 = vrot.lane.b32.xlu0 %v1703, 16
      %v1720 = vpop.permute.xlu0 %1719
      %1721 = vrot.lane.b32.xlu0 %v1706, 16
      %v1722 = vpop.permute.xlu0 %1721
      %1732 = vrot.lane.b32.xlu0 %v1601, 24
      %v1733 = vpop.permute.xlu0 %1732
      %1734 = vrot.lane.b32.xlu0 %v1603, 24
      %v1735 = vpop.permute.xlu0 %1734
      %1736 = vrot.lane.b32.xlu0 %v1605, 24
      %v1737 = vpop.permute.xlu0 %1736
      %1738 = vrot.lane.b32.xlu0 %v1607, 24
      %v1739 = vpop.permute.xlu0 %1738
      %1740 = vrot.lane.b32.xlu0 %v1609, 24
      %v1741 = vpop.permute.xlu0 %1740
      %1742 = vrot.lane.b32.xlu0 %v1611, 24
      %v1743 = vpop.permute.xlu0 %1742
      %1744 = vrot.lane.b32.xlu0 %v1613, 24
      %v1745 = vpop.permute.xlu0 %1744
      %1746 = vrot.lane.b32.xlu0 %v1615, 24
      %v1747 = vpop.permute.xlu0 %1746
      %v1757 = vrot.slane %v1615, 1
      %v1758 = vrot.slane %v1616, 1
      %v1759 = vsel %vm1067, %v1757, %v1758
      %1760 = vrot.lane.b32.xlu0 %v1640, 32
      %v1761 = vpop.permute.xlu0 %1760
      %1762 = vrot.lane.b32.xlu0 %v1643, 32
      %v1763 = vpop.permute.xlu0 %1762
      %1764 = vrot.lane.b32.xlu0 %v1646, 32
      %v1765 = vpop.permute.xlu0 %1764
      %1766 = vrot.lane.b32.xlu0 %v1649, 32
      %v1767 = vpop.permute.xlu0 %1766
      %1768 = vrot.lane.b32.xlu0 %v1652, 32
      %v1769 = vpop.permute.xlu0 %1768
      %1770 = vrot.lane.b32.xlu0 %v1655, 32
      %v1771 = vpop.permute.xlu0 %1770
      %1772 = vrot.lane.b32.xlu0 %v1658, 32
      %v1773 = vpop.permute.xlu0 %1772
      %1774 = vrot.lane.b32.xlu0 %v1759, 32
      %v1775 = vpop.permute.xlu0 %1774
      %v1784 = vrot.slane %v1615, 2
      %v1785 = vrot.slane %v1616, 2
      %v1786 = vsel %vm1116, %v1784, %v1785
      %1787 = vrot.lane.b32.xlu0 %v1688, 40
      %v1788 = vpop.permute.xlu0 %1787
      %1789 = vrot.lane.b32.xlu0 %v1691, 40
      %v1790 = vpop.permute.xlu0 %1789
      %1791 = vrot.lane.b32.xlu0 %v1694, 40
      %v1792 = vpop.permute.xlu0 %1791
      %1793 = vrot.lane.b32.xlu0 %v1697, 40
      %v1794 = vpop.permute.xlu0 %1793
      %1795 = vrot.lane.b32.xlu0 %v1700, 40
      %v1796 = vpop.permute.xlu0 %1795
      %1797 = vrot.lane.b32.xlu0 %v1703, 40
      %v1798 = vpop.permute.xlu0 %1797
      %1799 = vrot.lane.b32.xlu0 %v1706, 40
      %v1800 = vpop.permute.xlu0 %1799
      %1801 = vrot.lane.b32.xlu0 %v1786, 40
      %v1802 = vpop.permute.xlu0 %1801
      %1812 = vrot.lane.b32.xlu0 %v1603, 48
      %v1813 = vpop.permute.xlu0 %1812
      %1814 = vrot.lane.b32.xlu0 %v1605, 48
      %v1815 = vpop.permute.xlu0 %1814
      %1816 = vrot.lane.b32.xlu0 %v1607, 48
      %v1817 = vpop.permute.xlu0 %1816
      %1818 = vrot.lane.b32.xlu0 %v1609, 48
      %v1819 = vpop.permute.xlu0 %1818
      %1820 = vrot.lane.b32.xlu0 %v1611, 48
      %v1821 = vpop.permute.xlu0 %1820
      %1822 = vrot.lane.b32.xlu0 %v1613, 48
      %v1823 = vpop.permute.xlu0 %1822
      %1824 = vrot.lane.b32.xlu0 %v1615, 48
      %v1825 = vpop.permute.xlu0 %1824
      %1826 = vrot.lane.b32.xlu0 %v1617, 48
      %v1827 = vpop.permute.xlu0 %1826
      %v1837 = vrot.slane %v1617, 1
      %v1838 = vrot.slane %v1618, 1
      %v1839 = vsel %vm1067, %v1837, %v1838
      %1840 = vrot.lane.b32.xlu0 %v1643, 56
      %v1841 = vpop.permute.xlu0 %1840
      %1842 = vrot.lane.b32.xlu0 %v1646, 56
      %v1843 = vpop.permute.xlu0 %1842
      %1844 = vrot.lane.b32.xlu0 %v1649, 56
      %v1845 = vpop.permute.xlu0 %1844
      %1846 = vrot.lane.b32.xlu0 %v1652, 56
      %v1847 = vpop.permute.xlu0 %1846
      %1848 = vrot.lane.b32.xlu0 %v1655, 56
      %v1849 = vpop.permute.xlu0 %1848
      %1850 = vrot.lane.b32.xlu0 %v1658, 56
      %v1851 = vpop.permute.xlu0 %1850
      %1852 = vrot.lane.b32.xlu0 %v1759, 56
      %v1853 = vpop.permute.xlu0 %1852
      %1854 = vrot.lane.b32.xlu0 %v1839, 56
      %v1855 = vpop.permute.xlu0 %1854
      %v1864 = vrot.slane %v1617, 2
      %v1865 = vrot.slane %v1618, 2
      %v1866 = vsel %vm1116, %v1864, %v1865
      %1867 = vrot.lane.b32.xlu0 %v1691, 64
      %v1868 = vpop.permute.xlu0 %1867
      %1869 = vrot.lane.b32.xlu0 %v1694, 64
      %v1870 = vpop.permute.xlu0 %1869
      %1871 = vrot.lane.b32.xlu0 %v1697, 64
      %v1872 = vpop.permute.xlu0 %1871
      %1873 = vrot.lane.b32.xlu0 %v1700, 64
      %v1874 = vpop.permute.xlu0 %1873
      %1875 = vrot.lane.b32.xlu0 %v1703, 64
      %v1876 = vpop.permute.xlu0 %1875
      %1877 = vrot.lane.b32.xlu0 %v1706, 64
      %v1878 = vpop.permute.xlu0 %1877
      %1879 = vrot.lane.b32.xlu0 %v1786, 64
      %v1880 = vpop.permute.xlu0 %1879
      %1881 = vrot.lane.b32.xlu0 %v1866, 64
      %v1882 = vpop.permute.xlu0 %1881
      %v1891 = vsel %vm1333, %v1599, %v1660
      %v1892 = vsel %vm1333, %v1601, %v1662
      %v1893 = vsel %vm1333, %v1603, %v1664
      %v1894 = vsel %vm1333, %v1605, %v1666
      %v1895 = vsel %vm1333, %v1607, %v1668
      %v1896 = vsel %vm1333, %v1609, %v1670
      %v1897 = vsel %vm1333, %v1611, %v1672
      %v1898 = vsel %vm1333, %v1613, %v1674
      %v1899 = vsel %vm1351, %v1891, %v1708
      %v1900 = vsel %vm1351, %v1892, %v1710
      %v1901 = vsel %vm1351, %v1893, %v1712
      %v1902 = vsel %vm1351, %v1894, %v1714
      %v1903 = vsel %vm1351, %v1895, %v1716
      %v1904 = vsel %vm1351, %v1896, %v1718
      %v1905 = vsel %vm1351, %v1897, %v1720
      %v1906 = vsel %vm1351, %v1898, %v1722
      %v1907 = vsel %vm1369, %v1899, %v1733
      %v1908 = vsel %vm1369, %v1900, %v1735
      %v1909 = vsel %vm1369, %v1901, %v1737
      %v1910 = vsel %vm1369, %v1902, %v1739
      %v1911 = vsel %vm1369, %v1903, %v1741
      %v1912 = vsel %vm1369, %v1904, %v1743
      %v1913 = vsel %vm1369, %v1905, %v1745
      %v1914 = vsel %vm1369, %v1906, %v1747
      %v1915 = vsel %vm1387, %v1907, %v1761
      %v1916 = vsel %vm1387, %v1908, %v1763
      %v1917 = vsel %vm1387, %v1909, %v1765
      %v1918 = vsel %vm1387, %v1910, %v1767
      %v1919 = vsel %vm1387, %v1911, %v1769
      %v1920 = vsel %vm1387, %v1912, %v1771
      %v1921 = vsel %vm1387, %v1913, %v1773
      %v1922 = vsel %vm1387, %v1914, %v1775
      %vm1923 = vcmask 326656
      %v1924 = vsel %vm1923, %v1915, %v1788
      %v1925 = vsel %vm1923, %v1916, %v1790
      %v1926 = vsel %vm1923, %v1917, %v1792
      %v1927 = vsel %vm1923, %v1918, %v1794
      %v1928 = vsel %vm1923, %v1919, %v1796
      %v1929 = vsel %vm1923, %v1920, %v1798
      %v1930 = vsel %vm1923, %v1921, %v1800
      %v1931 = vsel %vm1923, %v1922, %v1802
      %vm1932 = vcmask 392192
      %v1933 = vsel %vm1932, %v1924, %v1813
      %v1934 = vsel %vm1932, %v1925, %v1815
      %v1935 = vsel %vm1932, %v1926, %v1817
      %v1936 = vsel %vm1932, %v1927, %v1819
      %v1937 = vsel %vm1932, %v1928, %v1821
      %v1938 = vsel %vm1932, %v1929, %v1823
      %v1939 = vsel %vm1932, %v1930, %v1825
      %v1940 = vsel %vm1932, %v1931, %v1827
      %vm1941 = vcmask 457728
      %v1942 = vsel %vm1941, %v1933, %v1841
      %v1943 = vsel %vm1941, %v1934, %v1843
      %v1944 = vsel %vm1941, %v1935, %v1845
      %v1945 = vsel %vm1941, %v1936, %v1847
      %v1946 = vsel %vm1941, %v1937, %v1849
      %v1947 = vsel %vm1941, %v1938, %v1851
      %v1948 = vsel %vm1941, %v1939, %v1853
      %v1949 = vsel %vm1941, %v1940, %v1855
      %vm1950 = vcmask 523264
      %v1951 = vsel %vm1950, %v1942, %v1868
      %v1952 = vsel %vm1950, %v1943, %v1870
      %v1953 = vsel %vm1950, %v1944, %v1872
      %v1954 = vsel %vm1950, %v1945, %v1874
      %v1955 = vsel %vm1950, %v1946, %v1876
      %v1956 = vsel %vm1950, %v1947, %v1878
      %v1957 = vsel %vm1950, %v1948, %v1880
      %v1958 = vsel %vm1950, %v1949, %v1882
      %v1959 = vld [vmem:[%s3] sm:$0xff]
      %v1960 = vld [vmem:[%s3 + $0x8] sm:$0xff]
      %v1961 = vld [vmem:[%s3 + $0x10] sm:$0xff]
      %v1962 = vld [vmem:[%s3 + $0x18] sm:$0xff]
      %v1963 = vld [vmem:[%s3 + $0x20] sm:$0xff]
      %v1964 = vld [vmem:[%s3 + $0x28] sm:$0xff]
      %v1965 = vld [vmem:[%s3 + $0x30] sm:$0xff]
      %v1966 = vld [vmem:[%s3 + $0x38] sm:$0xff]
      %v1967 = vld [vmem:[%s3 + $0x40] sm:$0xff]
      %vm1968 = vcmask 588800
      %v1970 = vsel %vm1968, %v1951, 0
      %v1973 = vsel %vm1968, %v1952, 0
      %v1976 = vsel %vm1968, %v1953, 0
      %v1979 = vsel %vm1968, %v1954, 0
      %v1982 = vsel %vm1968, %v1955, 0
      %v1985 = vsel %vm1968, %v1956, 0
      %v1988 = vsel %vm1968, %v1957, 0
      %v1991 = vsel %vm1968, %v1958, 0
      %1993 = vmatprep.subr.mxu0 0.0
      %1994 = vmatpush1.msra.mxu0 0.0
      %1995 = vmatprep.subr.mxu0 0.0
      %1996 = vmatpush1.msra.mxu0 0.0
      %1997 = vmatprep.subr.mxu0 0.0
      %1998 = vmatpush1.msra.mxu0 0.0
      %1999 = vmatprep.subr.mxu0 0.0
      %2000 = vmatpush1.msra.mxu0 0.0
      %2001 = vmatprep.subr.mxu0 0.0
      %2002 = vmatpush1.msra.mxu0 0.0
      %2003 = vmatprep.subr.mxu0 0.0
      %2004 = vmatpush1.msra.mxu0 0.0
      %2005 = vmatprep.subr.mxu0 0.0
      %2006 = vmatpush1.msra.mxu0 0.0
      %2007 = vmatprep.subr.mxu0 0.0
      %2008 = vmatpush1.msra.mxu0 %v1967
      %2009 = vmatprep.subr.mxu0 0.0
      %2010 = vmatpush1.msra.mxu0 %v1966
      %2011 = vmatprep.subr.mxu0 0.0
      %2012 = vmatpush1.msra.mxu0 %v1965
      %2013 = vmatprep.subr.mxu0 0.0
      %2014 = vmatpush1.msra.mxu0 %v1964
      %2015 = vmatprep.subr.mxu0 0.0
      %2016 = vmatpush1.msra.mxu0 %v1963
      %2017 = vmatprep.subr.mxu0 0.0
      %2018 = vmatpush1.msra.mxu0 %v1962
      %2019 = vmatprep.subr.mxu0 0.0
      %2020 = vmatpush1.msra.mxu0 %v1961
      %2021 = vmatprep.subr.mxu0 0.0
      %2022 = vmatpush1.msra.mxu0 %v1960
      %2023 = vmatprep.subr.mxu0 0.0
      %2024 = vmatpush1.msra.mxu0 %v1959
      %2025 = vmatprep.subr.mxu0 0.0
      %2026 = vmatpush2.msra.mxu0 0.0
      %2027 = vmatprep.subr.mxu0 0.0
      %2028 = vmatpush2.msra.mxu0 0.0
      %2029 = vmatprep.subr.mxu0 0.0
      %2030 = vmatpush2.msra.mxu0 0.0
      %2031 = vmatprep.subr.mxu0 0.0
      %2032 = vmatpush2.msra.mxu0 0.0
      %2033 = vmatprep.subr.mxu0 0.0
      %2034 = vmatpush2.msra.mxu0 0.0
      %2035 = vmatprep.subr.mxu0 0.0
      %2036 = vmatpush2.msra.mxu0 0.0
      %2037 = vmatprep.subr.mxu0 0.0
      %2038 = vmatpush2.msra.mxu0 0.0
      %2039 = vmatprep.subr.mxu0 0.0
      %2040 = vmatpush2.msra.mxu0 0.0
      %2041 = vmatprep.subr.mxu0 0.0
      %2042 = vmatpush2.msra.mxu0 0.0
      %2043 = vmatprep.subr.mxu0 0.0
      %2044 = vmatpush2.msra.mxu0 0.0
      %2045 = vmatprep.subr.mxu0 0.0
      %2046 = vmatpush2.msra.mxu0 0.0
      %2047 = vmatprep.subr.mxu0 0.0
      %2048 = vmatpush2.msra.mxu0 0.0
      %2049 = vmatprep.subr.mxu0 0.0
      %2050 = vmatpush2.msra.mxu0 0.0
      %2051 = vmatprep.subr.mxu0 0.0
      %2052 = vmatpush2.msra.mxu0 0.0
      %2053 = vmatprep.subr.mxu0 0.0
      %2054 = vmatpush2.msra.mxu0 0.0
      %2055 = vmatprep.subr.mxu0 0.0
      %2056 = vmatpush2.msra.mxu0 0.0
      %2057 = vmatprep.mubr.f32.mxu0 0.0
      %2058 = vmatmul.mubr.f32.gmra.mxu0 %v1970
      %v2059 = vpop.f32.mrf.mxu0
      %v2060 = vadd.f32 0.0, %v2059
      %v2061 = vpop.f32.mrf.mxu0
      %2062 = vmatprep.mubr.f32.mxu0 0.0
      %2063 = vmatmul.mubr.f32.gmra.mxu0 %v1973
      %v2064 = vpop.f32.mrf.mxu0
      %v2065 = vadd.f32 0.0, %v2064
      %v2066 = vpop.f32.mrf.mxu0
      %2067 = vmatprep.mubr.f32.mxu0 0.0
      %2068 = vmatmul.mubr.f32.gmra.mxu0 %v1976
      %v2069 = vpop.f32.mrf.mxu0
      %v2070 = vadd.f32 0.0, %v2069
      %v2071 = vpop.f32.mrf.mxu0
      %2072 = vmatprep.mubr.f32.mxu0 0.0
      %2073 = vmatmul.mubr.f32.gmra.mxu0 %v1979
      %v2074 = vpop.f32.mrf.mxu0
      %v2075 = vadd.f32 0.0, %v2074
      %v2076 = vpop.f32.mrf.mxu0
      %2077 = vmatprep.mubr.f32.mxu0 0.0
      %2078 = vmatmul.mubr.f32.gmra.mxu0 %v1982
      %v2079 = vpop.f32.mrf.mxu0
      %v2080 = vadd.f32 0.0, %v2079
      %v2081 = vpop.f32.mrf.mxu0
      %2082 = vmatprep.mubr.f32.mxu0 0.0
      %2083 = vmatmul.mubr.f32.gmra.mxu0 %v1985
      %v2084 = vpop.f32.mrf.mxu0
      %v2085 = vadd.f32 0.0, %v2084
      %v2086 = vpop.f32.mrf.mxu0
      %2087 = vmatprep.mubr.f32.mxu0 0.0
      %2088 = vmatmul.mubr.f32.gmra.mxu0 %v1988
      %v2089 = vpop.f32.mrf.mxu0
      %v2090 = vadd.f32 0.0, %v2089
      %v2091 = vpop.f32.mrf.mxu0
      %2092 = vmatprep.mubr.f32.mxu0 0.0
      %2093 = vmatmul.mubr.f32.gmra.mxu0 %v1991
      %v2094 = vpop.f32.mrf.mxu0
      %v2095 = vadd.f32 0.0, %v2094
      %v2096 = vpop.f32.mrf.mxu0
      %2097 = vdwg.mxu0
      %v2098 = vld [vmem:[%s4] sm:$0x1]
      %v2099 = vlaneseq
      %v2100 = vshrl.u32 %v2099, 7
      %v2101 = vsub.s32 0, %v2100
      %v2102 = vrot.slane %v2098, %v2101
      %v2103 = vmul.f32 %v2060, %v2102
      %v2104 = vmul.f32 %v2065, %v2102
      %v2105 = vmul.f32 %v2070, %v2102
      %v2106 = vmul.f32 %v2075, %v2102
      %v2107 = vmul.f32 %v2080, %v2102
      %v2108 = vmul.f32 %v2085, %v2102
      %v2109 = vmul.f32 %v2090, %v2102
      %v2110 = vmul.f32 %v2095, %v2102
      %v2111 = vld [vmem:[%s4 + $0x1] sm:$0x1]
      %v2112 = vlaneseq
      %v2113 = vshrl.u32 %v2112, 7
      %v2114 = vsub.s32 0, %v2113
      %v2115 = vrot.slane %v2111, %v2114
      %v2116 = vadd.f32 %v2103, %v2115
      %v2117 = vadd.f32 %v2104, %v2115
      %v2118 = vadd.f32 %v2105, %v2115
      %v2119 = vadd.f32 %v2106, %v2115
      %v2120 = vadd.f32 %v2107, %v2115
      %v2121 = vadd.f32 %v2108, %v2115
      %v2122 = vadd.f32 %v2109, %v2115
      %v2123 = vadd.f32 %v2110, %v2115
      %v2124 = vmax.f32 %v2116, 0.0
      %v2125 = vmax.f32 %v2117, 0.0
      %v2126 = vmax.f32 %v2118, 0.0
      %v2127 = vmax.f32 %v2119, 0.0
      %v2128 = vmax.f32 %v2120, 0.0
      %v2129 = vmax.f32 %v2121, 0.0
      %v2130 = vmax.f32 %v2122, 0.0
      %v2131 = vmax.f32 %v2123, 0.0
      %2132 = vst.msk [vmem:[%s224] sm:$0xff] %vm1333, %v2124
      %2133 = vst.msk [vmem:[%s224 + $0x8] sm:$0xff] %vm1333, %v2125
      %2134 = vst.msk [vmem:[%s224 + $0x10] sm:$0xff] %vm1333, %v2126
      %2135 = vst.msk [vmem:[%s224 + $0x18] sm:$0xff] %vm1333, %v2127
      %2136 = vst.msk [vmem:[%s224 + $0x20] sm:$0xff] %vm1333, %v2128
      %2137 = vst.msk [vmem:[%s224 + $0x28] sm:$0xff] %vm1333, %v2129
      %2138 = vst.msk [vmem:[%s224 + $0x30] sm:$0xff] %vm1333, %v2130
      %2139 = vst.msk [vmem:[%s224 + $0x38] sm:$0xff] %vm1333, %v2131
      %p2140 = scmp.lt.s32.totalorder %s16, 1
      %s2141 = scalar_select %p2140, %s16, 1
      %s2142 = smul.addr %s2141, 8
      %s2143 = smul.addr %s2142, 8
      %s2144 = scalar_lea.vmem %s5, %s2143
      // Predicated region
      $region41: #{tpu_custom_call.1} parent=39 // pred_check
        %p2145 = pneg %p144
      $region42: #{tpu_custom_call.1} parent=39 // pred_check_branch
        %2147 = sbr.rel (%p2145) target = $region44
      $region43: #{tpu_custom_call.1} parent=39 // pred_region
        _
      $region44: #{tpu_custom_call.1} parent=39 // pred_fallthru
        _
    $region40: #{tpu_custom_call.1} parent=5 // pred_fallthru
      _
    %p2148 = scmp.le.s32.totalorder 2, %s11
    // Predicated region
    $region45: #{tpu_custom_call.1} parent=5 // pred_check
      %p2149 = pneg %p2148
    $region46: #{tpu_custom_call.1} parent=5 // pred_check_branch
      %2151 = sbr.rel (%p2149) target = $region48
    $region47: #{tpu_custom_call.1} parent=5 // pred_region
      %s2152 = ssub.s32 %s11, 2
      // Predicated region
      $region49: #{tpu_custom_call.1} parent=47 // pred_check
        %p2153 = pneg %p150
      $region50: #{tpu_custom_call.1} parent=47 // pred_check_branch
        %2155 = sbr.rel (%p2153) target = $region52
      $region51: #{tpu_custom_call.1} parent=47 // pred_region
        %p2156 = scmp.lt.s32.totalorder %s17, 1
        %s2157 = scalar_select %p2156, %s17, 1
        %s2158 = smul.addr %s2157, 8
        %s2159 = smul.addr %s2158, 8
        %s2160 = scalar_lea.vmem %s5, %s2159
      $region52: #{tpu_custom_call.1} parent=47 // pred_fallthru
        _
    $region48: #{tpu_custom_call.1} parent=5 // pred_fallthru
      _
  $region6: #{tpu_custom_call.1} parent=0 // loop_footer
    %s15 = sadd.s32 1, %s11
  $region7: #{tpu_custom_call.1} parent=0 // loop_footer_branch
    %10 = sbr.rel target = $region3
  $region8: #{tpu_custom_call.1} parent=0 // loop_exit
    _

</llo_original>
